<compile_context>
chip_gen: v5e
topology: v5e:2x2
jax: 0.10.0
libtpu: 0.0.40
codegen_flags: <defaults>
</compile_context>

<pallas_src>
import functools

import jax
import jax.numpy as jnp
from jax.experimental import pallas as pl
from jax.experimental.pallas import tpu as pltpu

_LANES = 128       # TPU lane width (pad contraction/output dims to this)
_OUT_LANES = 8     # lanes used for the per-row scalar output block


def _round_up(n, m):
    return (n + m - 1) // m * m


def _regressor_kernel(x_ref, w1_ref, b1_ref, w2_ref, b2_ref,
                      w3_ref, b3_ref, w4_ref, b4_ref, out_ref):
    x_bf = x_ref[...]                                    # (TB, clip) bf16
    x32 = x_bf.astype(jnp.float32)                       # f32 copy for residual

    # --- CLIPAdapter: Linear -> ReLU -> Linear, residual add (f32 accum) ---
    h1 = jnp.dot(x_bf, w1_ref[...],
                 preferred_element_type=jnp.float32) + b1_ref[...]
    h1 = jnp.maximum(h1, 0.0)

    adapt = jnp.dot(h1.astype(jnp.bfloat16), w2_ref[...],
                    preferred_element_type=jnp.float32) + b2_ref[...]
    adapted = x32 + adapt                                # residual in f32

    # --- regressor: Linear -> ReLU -> Linear(., 1) ---
    h2 = jnp.dot(adapted.astype(jnp.bfloat16), w3_ref[...],
                 preferred_element_type=jnp.float32) + b3_ref[...]
    h2 = jnp.maximum(h2, 0.0)

    # Scalar head as VPU mul + XLU lane reduction (no N=1 MXU pass), f32.
    out_col = jnp.sum(h2 * w4_ref[...], axis=-1, keepdims=True) + b4_ref[...]

    # Narrow (TB, 8) output block: tiny HBM writeback, masked vst is cheap.
    out_ref[...] = jnp.broadcast_to(out_col, out_ref.shape)


def _resident_spec(shape):
    """Weights/biases: constant index_map (stay resident), single-buffered."""
    idx = lambda i: (0,) * len(shape)
    try:
        return pl.BlockSpec(shape, idx, pipeline_mode=pl.Buffered(1))
    except TypeError:  # older jax without pipeline_mode kwarg
        return pl.BlockSpec(shape, idx)


def _vmem_limit_bytes(tile_b, clip, adapt, hidden):
    """Rough per-step VMEM footprint with headroom; capped for v7x (64 MiB phys)."""
    bf16, f32 = 2, 4
    x_bufs = 2 * tile_b * clip * bf16                       # double-buffered x tile
    o_bufs = 2 * tile_b * _OUT_LANES * f32                  # double-buffered out tile
    weights = (clip * adapt + adapt * clip + clip * hidden) * bf16 \
        + (adapt + clip + hidden + hidden + 1) * f32         # single-buffered residents
    interm = tile_b * (clip + adapt + 2 * clip + hidden) * f32  # x32,h1,adapt,adapted,h2
    est = x_bufs + o_bufs + weights + interm
    return int(min(max(int(est * 1.5), 24 << 20), 48 << 20))


@functools.partial(jax.jit, static_argnames=("tile_b",))
def clip_adapter_length_regressor(x, params, *, tile_b=1024):
    """x: (B, clip_dim) f32.  Returns (B,) f32.

    tile_b: batch tile. 1024 is safe everywhere; v6e/v7x can use 2048
    (keep it a multiple of 256 for MXU alignment).
    """
    B, clip_dim = x.shape
    w1, b1, w2, b2, w3, b3, w4, b4 = params

    # Zero-pad adapter/hidden dims up to a multiple of 128 (numerically exact:
    # relu(0 + 0) = 0, and the matching zero rows of the next weight add 0).
    A, Ap = w1.shape[1], _round_up(w1.shape[1], _LANES)
    if Ap != A:
        w1 = jnp.pad(w1, ((0, 0), (0, Ap - A)))
        b1 = jnp.pad(b1, ((0, 0), (0, Ap - A)))
        w2 = jnp.pad(w2, ((0, Ap - A), (0, 0)))
    H, Hp = w3.shape[1], _round_up(w3.shape[1], _LANES)
    if Hp != H:
        w3 = jnp.pad(w3, ((0, 0), (0, Hp - H)))
        b3 = jnp.pad(b3, ((0, 0), (0, Hp - H)))
        w4 = jnp.pad(w4, ((0, Hp - H), (0, 0)))
    w4r = w4.reshape(1, Hp)  # (1, hidden) row for the in-kernel lane reduction

    # bf16 for the three big matmul operands (f32 accumulation in-kernel).
    x_bf = x.astype(jnp.bfloat16)
    w1 = w1.astype(jnp.bfloat16)
    w2 = w2.astype(jnp.bfloat16)
    w3 = w3.astype(jnp.bfloat16)

    # Batch tile: multiple of 16 (bf16 sublane packing), B padded to tile_b so
    # every grid block is full.
    tile_b = max(16, min(tile_b, _round_up(B, 16)))
    tile_b = _round_up(tile_b, 16)
    Bp = _round_up(B, tile_b)
    if Bp != B:
        x_bf = jnp.pad(x_bf, ((0, Bp - B), (0, 0)))
    grid = (Bp // tile_b,)

    out = pl.pallas_call(
        _regressor_kernel,
        grid=grid,
        out_shape=jax.ShapeDtypeStruct((Bp, _OUT_LANES), jnp.float32),
        in_specs=[
            pl.BlockSpec((tile_b, clip_dim), lambda i: (i, 0)),  # x: tiled over batch
            _resident_spec(w1.shape),                            # weights/biases stay
            _resident_spec(b1.shape),                            # resident in VMEM
            _resident_spec(w2.shape),
            _resident_spec(b2.shape),
            _resident_spec(w3.shape),
            _resident_spec(b3.shape),
            _resident_spec(w4r.shape),
            _resident_spec(b4.shape),
        ],
        out_specs=pl.BlockSpec((tile_b, _OUT_LANES), lambda i: (i, 0)),
        compiler_params=pltpu.CompilerParams(
            dimension_semantics=("parallel",),
            vmem_limit_bytes=_vmem_limit_bytes(tile_b, clip_dim, Ap, Hp)),
    )(x_bf, w1, b1, w2, b2, w3, b3, w4r, b4)

    return out[:B, 0]  # .squeeze(-1) equivalent


def init_params(key, clip_dim, adapter_dim, hidden_dim):
    """Deterministic synthetic parameters (PyTorch Linear shapes, pre-transposed to (in, out))."""
    ks = jax.random.split(key, 8)

    def lin(kw, kb, fan_in, fan_out):
        bound = 1.0 / jnp.sqrt(fan_in)
        w = jax.random.uniform(kw, (fan_in, fan_out), jnp.float32, -bound, bound)
        b = jax.random.uniform(kb, (1, fan_out), jnp.float32, -bound, bound)
        return w, b

    w1, b1 = lin(ks[0], ks[1], clip_dim, adapter_dim)     # adapter Linear 1
    w2, b2 = lin(ks[2], ks[3], adapter_dim, clip_dim)     # adapter Linear 2
    w3, b3 = lin(ks[4], ks[5], clip_dim, hidden_dim)      # regressor Linear 1
    w4, b4 = lin(ks[6], ks[7], hidden_dim, 1)             # regressor Linear 2
    return (w1, b1, w2, b2, w3, b3, w4, b4)


def _reference_f32(x, params):
    """Full f32 reference (PyTorch-equivalent numerics)."""
    w1, b1, w2, b2, w3, b3, w4, b4 = params
    hp = jax.lax.Precision.HIGHEST
    h1 = jnp.maximum(jnp.dot(x, w1, precision=hp) + b1, 0.0)
    adapted = x + (jnp.dot(h1, w2, precision=hp) + b2)
    h2 = jnp.maximum(jnp.dot(adapted, w3, precision=hp) + b3, 0.0)
    return (jnp.dot(h2, w4, precision=hp) + b4)[:, 0]


def _reference_bf16(x, params):
    """Reference with the same bf16-in / f32-accumulate quantization as the kernel."""
    w1, b1, w2, b2, w3, b3, w4, b4 = params
    bf = jnp.bfloat16
    f32 = jnp.float32
    x_bf = x.astype(bf)
    h1 = jnp.maximum(
        jnp.dot(x_bf, w1.astype(bf), preferred_element_type=f32) + b1, 0.0)
    adapted = x_bf.astype(f32) + (
        jnp.dot(h1.astype(bf), w2.astype(bf), preferred_element_type=f32) + b2)
    h2 = jnp.maximum(
        jnp.dot(adapted.astype(bf), w3.astype(bf), preferred_element_type=f32) + b3, 0.0)
    return (jnp.dot(h2, w4, precision=jax.lax.Precision.HIGHEST) + b4)[:, 0]


if __name__ == "__main__":
    # Module-default feature sizes, modest batch; tile_b=32 exercises a 3-step grid.
    B, clip_dim, adapter_dim, hidden_dim = 96, 512, 256, 512

    key = jax.random.PRNGKey(0)
    k_x, k_p = jax.random.split(key)
    x = jax.random.normal(k_x, (B, clip_dim), dtype=jnp.float32)
    params = init_params(k_p, clip_dim, adapter_dim, hidden_dim)

    out = clip_adapter_length_regressor(x, params, tile_b=32)
    out = jax.block_until_ready(out)

    ref_bf16 = _reference_bf16(x, params)   # same quantization -> tight tolerance
    ref_f32 = _reference_f32(x, params)     # full-precision sanity check

    assert out.shape == (B,)
    assert jnp.allclose(out, ref_bf16, atol=1e-3, rtol=1e-3)
    assert jnp.allclose(out, ref_f32, atol=5e-2, rtol=5e-2)

    print("KERNEL_OK")
</pallas_src>

<mosaic_0001>
module attributes {stable_mosaic.version = 11 : i64} {
  func.func @_regressor_kernel(%arg0: i32, %arg1: memref<32x512xbf16, #tpu.memory_space<vmem>>, %arg2: memref<512x256xbf16, #tpu.memory_space<vmem>>, %arg3: memref<1x256xf32, #tpu.memory_space<vmem>>, %arg4: memref<256x512xbf16, #tpu.memory_space<vmem>>, %arg5: memref<1x512xf32, #tpu.memory_space<vmem>>, %arg6: memref<512x512xbf16, #tpu.memory_space<vmem>>, %arg7: memref<1x512xf32, #tpu.memory_space<vmem>>, %arg8: memref<1x512xf32, #tpu.memory_space<vmem>>, %arg9: memref<1x1xf32, #tpu.memory_space<vmem>>, %arg10: memref<32x8xf32, #tpu.memory_space<vmem>>) attributes {dimension_semantics = [#tpu.dimension_semantics<parallel>], iteration_bounds = array<i64: 3>, scalar_prefetch = 0 : i64, scratch_operands = 0 : i64, tpu.core_type = #tpu.core_type<tc>, window_params = [{transform_indices = @transform_0, window_bounds = array<i64: 32, 512>}, {pipeline_mode = #tpu.pipeline_mode<synchronous>, transform_indices = @transform_1, window_bounds = array<i64: 512, 256>}, {pipeline_mode = #tpu.pipeline_mode<synchronous>, transform_indices = @transform_2, window_bounds = array<i64: 1, 256>}, {pipeline_mode = #tpu.pipeline_mode<synchronous>, transform_indices = @transform_3, window_bounds = array<i64: 256, 512>}, {pipeline_mode = #tpu.pipeline_mode<synchronous>, transform_indices = @transform_4, window_bounds = array<i64: 1, 512>}, {pipeline_mode = #tpu.pipeline_mode<synchronous>, transform_indices = @transform_5, window_bounds = array<i64: 512, 512>}, {pipeline_mode = #tpu.pipeline_mode<synchronous>, transform_indices = @transform_6, window_bounds = array<i64: 1, 512>}, {pipeline_mode = #tpu.pipeline_mode<synchronous>, transform_indices = @transform_7, window_bounds = array<i64: 1, 512>}, {pipeline_mode = #tpu.pipeline_mode<synchronous>, transform_indices = @transform_8, window_bounds = array<i64: 1, 1>}, {transform_indices = @transform_9, window_bounds = array<i64: 32, 8>}]} {
    %c0 = arith.constant 0 : index
    %c0_0 = arith.constant 0 : index
    %0 = vector.load %arg1[%c0, %c0_0] : memref<32x512xbf16, #tpu.memory_space<vmem>>, vector<32x512xbf16>
    %1 = arith.extf %0 : vector<32x512xbf16> to vector<32x512xf32>
    %c0_1 = arith.constant 0 : index
    %c0_2 = arith.constant 0 : index
    %2 = vector.load %arg2[%c0_1, %c0_2] : memref<512x256xbf16, #tpu.memory_space<vmem>>, vector<512x256xbf16>
    %cst = arith.constant dense<0.000000e+00> : vector<32x256xf32>
    %3 = tpu.matmul %0, %2, %cst {dimension_numbers = #tpu.dot_dimension_numbers<[1], [0], [0], [1], [0, 0, 1, 1], [], []>} : vector<32x512xbf16>, vector<512x256xbf16>, vector<32x256xf32> -> vector<32x256xf32>
    %c0_3 = arith.constant 0 : index
    %c0_4 = arith.constant 0 : index
    %4 = vector.load %arg3[%c0_3, %c0_4] : memref<1x256xf32, #tpu.memory_space<vmem>>, vector<1x256xf32>
    %5 = vector.broadcast %4 : vector<1x256xf32> to vector<32x256xf32>
    %6 = arith.addf %3, %5 : vector<32x256xf32>
    %cst_5 = arith.constant 0.000000e+00 : f32
    %7 = vector.broadcast %cst_5 : f32 to vector<32x256xf32>
    %8 = arith.maximumf %6, %7 : vector<32x256xf32>
    %9 = arith.truncf %8 : vector<32x256xf32> to vector<32x256xbf16>
    %c0_6 = arith.constant 0 : index
    %c0_7 = arith.constant 0 : index
    %10 = vector.load %arg4[%c0_6, %c0_7] : memref<256x512xbf16, #tpu.memory_space<vmem>>, vector<256x512xbf16>
    %cst_8 = arith.constant dense<0.000000e+00> : vector<32x512xf32>
    %11 = tpu.matmul %9, %10, %cst_8 {dimension_numbers = #tpu.dot_dimension_numbers<[1], [0], [0], [1], [0, 0, 1, 1], [], []>} : vector<32x256xbf16>, vector<256x512xbf16>, vector<32x512xf32> -> vector<32x512xf32>
    %c0_9 = arith.constant 0 : index
    %c0_10 = arith.constant 0 : index
    %12 = vector.load %arg5[%c0_9, %c0_10] : memref<1x512xf32, #tpu.memory_space<vmem>>, vector<1x512xf32>
    %13 = vector.broadcast %12 : vector<1x512xf32> to vector<32x512xf32>
    %14 = arith.addf %11, %13 : vector<32x512xf32>
    %15 = arith.addf %1, %14 : vector<32x512xf32>
    %16 = arith.truncf %15 : vector<32x512xf32> to vector<32x512xbf16>
    %c0_11 = arith.constant 0 : index
    %c0_12 = arith.constant 0 : index
    %17 = vector.load %arg6[%c0_11, %c0_12] : memref<512x512xbf16, #tpu.memory_space<vmem>>, vector<512x512xbf16>
    %cst_13 = arith.constant dense<0.000000e+00> : vector<32x512xf32>
    %18 = tpu.matmul %16, %17, %cst_13 {dimension_numbers = #tpu.dot_dimension_numbers<[1], [0], [0], [1], [0, 0, 1, 1], [], []>} : vector<32x512xbf16>, vector<512x512xbf16>, vector<32x512xf32> -> vector<32x512xf32>
    %c0_14 = arith.constant 0 : index
    %c0_15 = arith.constant 0 : index
    %19 = vector.load %arg7[%c0_14, %c0_15] : memref<1x512xf32, #tpu.memory_space<vmem>>, vector<1x512xf32>
    %20 = vector.broadcast %19 : vector<1x512xf32> to vector<32x512xf32>
    %21 = arith.addf %18, %20 : vector<32x512xf32>
    %cst_16 = arith.constant 0.000000e+00 : f32
    %22 = vector.broadcast %cst_16 : f32 to vector<32x512xf32>
    %23 = arith.maximumf %21, %22 : vector<32x512xf32>
    %c0_17 = arith.constant 0 : index
    %c0_18 = arith.constant 0 : index
    %24 = vector.load %arg8[%c0_17, %c0_18] : memref<1x512xf32, #tpu.memory_space<vmem>>, vector<1x512xf32>
    %25 = vector.broadcast %24 : vector<1x512xf32> to vector<32x512xf32>
    %26 = arith.mulf %23, %25 : vector<32x512xf32>
    %cst_19 = arith.constant dense<0.000000e+00> : vector<32xf32>
    %27 = vector.multi_reduction <add>, %26, %cst_19 [1] : vector<32x512xf32> to vector<32xf32>
    %28 = vector.shape_cast %27 : vector<32xf32> to vector<32x1xf32>
    %c0_20 = arith.constant 0 : index
    %c0_21 = arith.constant 0 : index
    %29 = vector.load %arg9[%c0_20, %c0_21] : memref<1x1xf32, #tpu.memory_space<vmem>>, vector<1x1xf32>
    %30 = vector.broadcast %29 : vector<1x1xf32> to vector<32x1xf32>
    %31 = arith.addf %28, %30 : vector<32x1xf32>
    %32 = vector.shape_cast %31 : vector<32x1xf32> to vector<32x1xf32>
    %33 = vector.broadcast %32 : vector<32x1xf32> to vector<32x8xf32>
    %c0_22 = arith.constant 0 : index
    %c0_23 = arith.constant 0 : index
    %34 = vector.load %arg10[%c0_22, %c0_23] : memref<32x8xf32, #tpu.memory_space<vmem>>, vector<32x8xf32>
    tpu.vector_store %arg10[%c0_22, %c0_23], %33 {strides = array<i32>} : memref<32x8xf32, #tpu.memory_space<vmem>>, vector<32x8xf32>,
    return
  }
  func.func @transform_0(%arg0: i32) -> (i32, i32) {
    %c0_i32 = arith.constant 0 : i32
    %c0_i32_0 = arith.constant 0 : i32
    return %arg0, %c0_i32 : i32, i32
  }
  func.func @transform_1(%arg0: i32) -> (i32, i32) {
    %c0_i32 = arith.constant 0 : i32
    %c0_i32_0 = arith.constant 0 : i32
    %c0_i32_1 = arith.constant 0 : i32
    return %c0_i32, %c0_i32_0 : i32, i32
  }
  func.func @transform_2(%arg0: i32) -> (i32, i32) {
    %c0_i32 = arith.constant 0 : i32
    %c0_i32_0 = arith.constant 0 : i32
    %c0_i32_1 = arith.constant 0 : i32
    return %c0_i32, %c0_i32_0 : i32, i32
  }
  func.func @transform_3(%arg0: i32) -> (i32, i32) {
    %c0_i32 = arith.constant 0 : i32
    %c0_i32_0 = arith.constant 0 : i32
    %c0_i32_1 = arith.constant 0 : i32
    return %c0_i32, %c0_i32_0 : i32, i32
  }
  func.func @transform_4(%arg0: i32) -> (i32, i32) {
    %c0_i32 = arith.constant 0 : i32
    %c0_i32_0 = arith.constant 0 : i32
    %c0_i32_1 = arith.constant 0 : i32
    return %c0_i32, %c0_i32_0 : i32, i32
  }
  func.func @transform_5(%arg0: i32) -> (i32, i32) {
    %c0_i32 = arith.constant 0 : i32
    %c0_i32_0 = arith.constant 0 : i32
    %c0_i32_1 = arith.constant 0 : i32
    return %c0_i32, %c0_i32_0 : i32, i32
  }
  func.func @transform_6(%arg0: i32) -> (i32, i32) {
    %c0_i32 = arith.constant 0 : i32
    %c0_i32_0 = arith.constant 0 : i32
    %c0_i32_1 = arith.constant 0 : i32
    return %c0_i32, %c0_i32_0 : i32, i32
  }
  func.func @transform_7(%arg0: i32) -> (i32, i32) {
    %c0_i32 = arith.constant 0 : i32
    %c0_i32_0 = arith.constant 0 : i32
    %c0_i32_1 = arith.constant 0 : i32
    return %c0_i32, %c0_i32_0 : i32, i32
  }
  func.func @transform_8(%arg0: i32) -> (i32, i32) {
    %c0_i32 = arith.constant 0 : i32
    %c0_i32_0 = arith.constant 0 : i32
    %c0_i32_1 = arith.constant 0 : i32
    return %c0_i32, %c0_i32_0 : i32, i32
  }
  func.func @transform_9(%arg0: i32) -> (i32, i32) {
    %c0_i32 = arith.constant 0 : i32
    %c0_i32_0 = arith.constant 0 : i32
    return %arg0, %c0_i32 : i32, i32
  }
}

</mosaic_0001>

<llo_original>
// kernel: clip_adapter_length_regressor.1
$region0: #{clip_adapter_length_regressor.1}
  #allocation0 [shape = 'u32[]', space=smem, size = 0x4, offset = 0x4, fixed_abs, tag = 'smem constant byte address 0x4 - core index']
  #allocation1 [shape = 'u32[72,128]{1,0:T(1,128)}', space=vmem, size = 0x9000, scoped, tag = 'internal scratch']
  #allocation2 [shape = 'f32[1,1]{1,0:T(1,128)S(1)}', space=vmem, size = 0x200, scoped, tag = 'scoped memory for clip_adapter_length_regressor.1']
  %s0 = inlined_call_operand.vmem [shape: bf16[96,512], index: 0, kind: input, shape index: {}]
  %s1 = inlined_call_operand.vmem [shape: bf16[512,256], index: 1, kind: input, shape index: {}]
  %s2 = inlined_call_operand.vmem [shape: f32[1,256], index: 2, kind: input, shape index: {}]
  %s3 = inlined_call_operand.vmem [shape: bf16[256,512], index: 3, kind: input, shape index: {}]
  %s4 = inlined_call_operand.vmem [shape: f32[1,512], index: 4, kind: input, shape index: {}]
  %s5 = inlined_call_operand.vmem [shape: bf16[512,512], index: 5, kind: input, shape index: {}]
  %s6 = inlined_call_operand.vmem [shape: f32[1,512], index: 6, kind: input, shape index: {}]
  %s7 = inlined_call_operand.vmem [shape: f32[1,512], index: 7, kind: input, shape index: {}]
  %s8 = inlined_call_operand.<no memory space> [shape: f32[1,1], index: 8, kind: input, shape index: {}]
  %s9 = inlined_call_operand.vmem [shape: f32[96,8], index: 9, kind: output, shape index: {}]
  %s10 = sld [smem:[#allocation0]]
  $region69: #{clip_adapter_length_regressor.1} parent=0
    _
  %s12 = ssub.s32 1, %s10
  %s13 = scalar_select 0, %s12, %s10
  %v14 = vstv %s8
  %15 = vst [vmem:[#allocation2] sm:$0x1] %v14
  loop: start=0, step=1, limit=5
  $region2: #{clip_adapter_length_regressor.1} parent=0 // loop_pre_header
    _
  $region3: #{clip_adapter_length_regressor.1} parent=0 // loop_header
    %s17 = sphi 0, %s21
    %p18 = scmp.ge.s32.totalorder %s17, 5
    %s27 = sphi 0, %s29
    %s30 = sphi 0, %s27
    %s31 = sphi 0, %s30
    %s47 = sphi 0, %s31
    %s51 = sphi 0, %s51
    %s53 = sphi 0, %s51
    %s54 = sphi 0, %s53
    %s68 = sphi 0, %s54
    %s72 = sphi 0, %s72
    %s74 = sphi 0, %s72
    %s75 = sphi 0, %s74
    %s89 = sphi 0, %s75
    %s93 = sphi 0, %s93
    %s95 = sphi 0, %s93
    %s96 = sphi 0, %s95
    %s110 = sphi 0, %s96
    %s114 = sphi 0, %s114
    %s116 = sphi 0, %s114
    %s117 = sphi 0, %s116
    %s131 = sphi 0, %s117
    %s135 = sphi 0, %s135
    %s137 = sphi 0, %s135
    %s138 = sphi 0, %s137
    %s152 = sphi 0, %s138
    %s156 = sphi 0, %s156
    %s158 = sphi 0, %s156
    %s159 = sphi 0, %s158
    %s173 = sphi 0, %s159
    %s177 = sphi 0, %s177
    %s179 = sphi 0, %s177
    %s180 = sphi 0, %s179
    %s194 = sphi 0, %s180
    %s198 = sphi 0, %s198
    %s200 = sphi 0, %s198
    %s201 = sphi 0, %s200
    %s215 = sphi 0, %s201
    %s221 = sphi 0, %s223
    %s224 = sphi 0, %s221
    %s225 = sphi 0, %s224
    %s241 = sphi 0, %s225
  $region4: #{clip_adapter_length_regressor.1} parent=0 // loop_header_branch
    %20 = sbr.rel (%p18) target = $region8
  $region5: #{clip_adapter_length_regressor.1} parent=0 // loop_body
    %s22 = ssub.s32 %s17, 1
    %s23 = ssub.s32 %s17, 2
    %s24 = sadd.s32 %s17, 1
    %s25 = ssub.s32 %s17, %s24
    %p26 = scmp.eq.s32.totalorder %s25, 0
    %s28 = sadd.s32 %s27, 1
    %s29 = scalar_select %p26, %s27, %s28
    %p32 = pneg %p26
    %p33 = scmp.eq.s32.totalorder %s17, 2
    %p34 = por %p32, %p33
    %p35 = scmp.ne.s32.totalorder %s27, %s30
    %p36 = scmp.eq.s32.totalorder %s17, 0
    %p37 = por %p35, %p36
    %p38 = scmp.ne.s32.totalorder %s27, %s30
    %p39 = scmp.eq.s32.totalorder %s22, 2
    %p40 = por %p38, %p39
    %p41 = scmp.ne.s32.totalorder %s30, %s31
    %p42 = scmp.eq.s32.totalorder %s22, 0
    %p43 = por %p41, %p42
    %p44 = scmp.ne.s32.totalorder %s30, %s31
    %p45 = scmp.eq.s32.totalorder %s23, 2
    %p46 = por %p44, %p45
    %p48 = scmp.ne.s32.totalorder %s31, %s47
    %p49 = scmp.eq.s32.totalorder %s23, 0
    %p50 = por %p48, %p49
    %s52 = sadd.s32 %s51, 1
    %p55 = scmp.eq.s32.totalorder %s17, 2
    %p56 = scmp.ne.s32.totalorder %s51, %s53
    %p57 = scmp.eq.s32.totalorder %s17, 0
    %p58 = por %p56, %p57
    %p59 = scmp.ne.s32.totalorder %s51, %s53
    %p60 = scmp.eq.s32.totalorder %s22, 2
    %p61 = por %p59, %p60
    %p62 = scmp.ne.s32.totalorder %s53, %s54
    %p63 = scmp.eq.s32.totalorder %s22, 0
    %p64 = por %p62, %p63
    %p65 = scmp.ne.s32.totalorder %s53, %s54
    %p66 = scmp.eq.s32.totalorder %s23, 2
    %p67 = por %p65, %p66
    %p69 = scmp.ne.s32.totalorder %s54, %s68
    %p70 = scmp.eq.s32.totalorder %s23, 0
    %p71 = por %p69, %p70
    %s73 = sadd.s32 %s72, 1
    %p76 = scmp.eq.s32.totalorder %s17, 2
    %p77 = scmp.ne.s32.totalorder %s72, %s74
    %p78 = scmp.eq.s32.totalorder %s17, 0
    %p79 = por %p77, %p78
    %p80 = scmp.ne.s32.totalorder %s72, %s74
    %p81 = scmp.eq.s32.totalorder %s22, 2
    %p82 = por %p80, %p81
    %p83 = scmp.ne.s32.totalorder %s74, %s75
    %p84 = scmp.eq.s32.totalorder %s22, 0
    %p85 = por %p83, %p84
    %p86 = scmp.ne.s32.totalorder %s74, %s75
    %p87 = scmp.eq.s32.totalorder %s23, 2
    %p88 = por %p86, %p87
    %p90 = scmp.ne.s32.totalorder %s75, %s89
    %p91 = scmp.eq.s32.totalorder %s23, 0
    %p92 = por %p90, %p91
    %s94 = sadd.s32 %s93, 1
    %p97 = scmp.eq.s32.totalorder %s17, 2
    %p98 = scmp.ne.s32.totalorder %s93, %s95
    %p99 = scmp.eq.s32.totalorder %s17, 0
    %p100 = por %p98, %p99
    %p101 = scmp.ne.s32.totalorder %s93, %s95
    %p102 = scmp.eq.s32.totalorder %s22, 2
    %p103 = por %p101, %p102
    %p104 = scmp.ne.s32.totalorder %s95, %s96
    %p105 = scmp.eq.s32.totalorder %s22, 0
    %p106 = por %p104, %p105
    %p107 = scmp.ne.s32.totalorder %s95, %s96
    %p108 = scmp.eq.s32.totalorder %s23, 2
    %p109 = por %p107, %p108
    %p111 = scmp.ne.s32.totalorder %s96, %s110
    %p112 = scmp.eq.s32.totalorder %s23, 0
    %p113 = por %p111, %p112
    %s115 = sadd.s32 %s114, 1
    %p118 = scmp.eq.s32.totalorder %s17, 2
    %p119 = scmp.ne.s32.totalorder %s114, %s116
    %p120 = scmp.eq.s32.totalorder %s17, 0
    %p121 = por %p119, %p120
    %p122 = scmp.ne.s32.totalorder %s114, %s116
    %p123 = scmp.eq.s32.totalorder %s22, 2
    %p124 = por %p122, %p123
    %p125 = scmp.ne.s32.totalorder %s116, %s117
    %p126 = scmp.eq.s32.totalorder %s22, 0
    %p127 = por %p125, %p126
    %p128 = scmp.ne.s32.totalorder %s116, %s117
    %p129 = scmp.eq.s32.totalorder %s23, 2
    %p130 = por %p128, %p129
    %p132 = scmp.ne.s32.totalorder %s117, %s131
    %p133 = scmp.eq.s32.totalorder %s23, 0
    %p134 = por %p132, %p133
    %s136 = sadd.s32 %s135, 1
    %p139 = scmp.eq.s32.totalorder %s17, 2
    %p140 = scmp.ne.s32.totalorder %s135, %s137
    %p141 = scmp.eq.s32.totalorder %s17, 0
    %p142 = por %p140, %p141
    %p143 = scmp.ne.s32.totalorder %s135, %s137
    %p144 = scmp.eq.s32.totalorder %s22, 2
    %p145 = por %p143, %p144
    %p146 = scmp.ne.s32.totalorder %s137, %s138
    %p147 = scmp.eq.s32.totalorder %s22, 0
    %p148 = por %p146, %p147
    %p149 = scmp.ne.s32.totalorder %s137, %s138
    %p150 = scmp.eq.s32.totalorder %s23, 2
    %p151 = por %p149, %p150
    %p153 = scmp.ne.s32.totalorder %s138, %s152
    %p154 = scmp.eq.s32.totalorder %s23, 0
    %p155 = por %p153, %p154
    %s157 = sadd.s32 %s156, 1
    %p160 = scmp.eq.s32.totalorder %s17, 2
    %p161 = scmp.ne.s32.totalorder %s156, %s158
    %p162 = scmp.eq.s32.totalorder %s17, 0
    %p163 = por %p161, %p162
    %p164 = scmp.ne.s32.totalorder %s156, %s158
    %p165 = scmp.eq.s32.totalorder %s22, 2
    %p166 = por %p164, %p165
    %p167 = scmp.ne.s32.totalorder %s158, %s159
    %p168 = scmp.eq.s32.totalorder %s22, 0
    %p169 = por %p167, %p168
    %p170 = scmp.ne.s32.totalorder %s158, %s159
    %p171 = scmp.eq.s32.totalorder %s23, 2
    %p172 = por %p170, %p171
    %p174 = scmp.ne.s32.totalorder %s159, %s173
    %p175 = scmp.eq.s32.totalorder %s23, 0
    %p176 = por %p174, %p175
    %s178 = sadd.s32 %s177, 1
    %p181 = scmp.eq.s32.totalorder %s17, 2
    %p182 = scmp.ne.s32.totalorder %s177, %s179
    %p183 = scmp.eq.s32.totalorder %s17, 0
    %p184 = por %p182, %p183
    %p185 = scmp.ne.s32.totalorder %s177, %s179
    %p186 = scmp.eq.s32.totalorder %s22, 2
    %p187 = por %p185, %p186
    %p188 = scmp.ne.s32.totalorder %s179, %s180
    %p189 = scmp.eq.s32.totalorder %s22, 0
    %p190 = por %p188, %p189
    %p191 = scmp.ne.s32.totalorder %s179, %s180
    %p192 = scmp.eq.s32.totalorder %s23, 2
    %p193 = por %p191, %p192
    %p195 = scmp.ne.s32.totalorder %s180, %s194
    %p196 = scmp.eq.s32.totalorder %s23, 0
    %p197 = por %p195, %p196
    %s199 = sadd.s32 %s198, 1
    %p202 = scmp.eq.s32.totalorder %s17, 2
    %p203 = scmp.ne.s32.totalorder %s198, %s200
    %p204 = scmp.eq.s32.totalorder %s17, 0
    %p205 = por %p203, %p204
    %p206 = scmp.ne.s32.totalorder %s198, %s200
    %p207 = scmp.eq.s32.totalorder %s22, 2
    %p208 = por %p206, %p207
    %p209 = scmp.ne.s32.totalorder %s200, %s201
    %p210 = scmp.eq.s32.totalorder %s22, 0
    %p211 = por %p209, %p210
    %p212 = scmp.ne.s32.totalorder %s200, %s201
    %p213 = scmp.eq.s32.totalorder %s23, 2
    %p214 = por %p212, %p213
    %p216 = scmp.ne.s32.totalorder %s201, %s215
    %p217 = scmp.eq.s32.totalorder %s23, 0
    %p218 = por %p216, %p217
    %s219 = ssub.s32 %s17, %s24
    %p220 = scmp.eq.s32.totalorder %s219, 0
    %s222 = sadd.s32 %s221, 1
    %s223 = scalar_select %p220, %s221, %s222
    %p226 = pneg %p220
    %p227 = scmp.eq.s32.totalorder %s17, 2
    %p228 = por %p226, %p227
    %p229 = scmp.ne.s32.totalorder %s221, %s224
    %p230 = scmp.eq.s32.totalorder %s17, 0
    %p231 = por %p229, %p230
    %p232 = scmp.ne.s32.totalorder %s221, %s224
    %p233 = scmp.eq.s32.totalorder %s22, 2
    %p234 = por %p232, %p233
    %p235 = scmp.ne.s32.totalorder %s224, %s225
    %p236 = scmp.eq.s32.totalorder %s22, 0
    %p237 = por %p235, %p236
    %p238 = scmp.ne.s32.totalorder %s224, %s225
    %p239 = scmp.eq.s32.totalorder %s23, 2
    %p240 = por %p238, %p239
    %p242 = scmp.ne.s32.totalorder %s225, %s241
    %p243 = scmp.eq.s32.totalorder %s23, 0
    %p244 = por %p242, %p243
    %p245 = scmp.le.s32.totalorder 1, %s17
    %p246 = scmp.lt.s32.totalorder %s17, 4
    %p247 = pnand %p245, %p246
    %p248 = pneg %p247
    // Predicated region
    $region9: #{clip_adapter_length_regressor.1} parent=5 // pred_check
      _
    $region10: #{clip_adapter_length_regressor.1} parent=5 // pred_check_branch
      %250 = sbr.rel (%p247) target = $region12
    $region11: #{clip_adapter_length_regressor.1} parent=5 // pred_region
      %s251 = ssub.s32 %s17, 1
      // Predicated region
      $region13: #{clip_adapter_length_regressor.1} parent=11 // pred_check
        %p252 = pneg %p64
      $region14: #{clip_adapter_length_regressor.1} parent=11 // pred_check_branch
        %254 = sbr.rel (%p252) target = $region16
      $region15: #{clip_adapter_length_regressor.1} parent=11 // pred_region
        _
      $region16: #{clip_adapter_length_regressor.1} parent=11 // pred_fallthru
        _
      // Predicated region
      $region17: #{clip_adapter_length_regressor.1} parent=11 // pred_check
        %p255 = pneg %p85
      $region18: #{clip_adapter_length_regressor.1} parent=11 // pred_check_branch
        %257 = sbr.rel (%p255) target = $region20
      $region19: #{clip_adapter_length_regressor.1} parent=11 // pred_region
        _
      $region20: #{clip_adapter_length_regressor.1} parent=11 // pred_fallthru
        _
      // Predicated region
      $region21: #{clip_adapter_length_regressor.1} parent=11 // pred_check
        %p258 = pneg %p106
      $region22: #{clip_adapter_length_regressor.1} parent=11 // pred_check_branch
        %260 = sbr.rel (%p258) target = $region24
      $region23: #{clip_adapter_length_regressor.1} parent=11 // pred_region
        _
      $region24: #{clip_adapter_length_regressor.1} parent=11 // pred_fallthru
        _
      // Predicated region
      $region25: #{clip_adapter_length_regressor.1} parent=11 // pred_check
        %p261 = pneg %p127
      $region26: #{clip_adapter_length_regressor.1} parent=11 // pred_check_branch
        %263 = sbr.rel (%p261) target = $region28
      $region27: #{clip_adapter_length_regressor.1} parent=11 // pred_region
        _
      $region28: #{clip_adapter_length_regressor.1} parent=11 // pred_fallthru
        _
      // Predicated region
      $region29: #{clip_adapter_length_regressor.1} parent=11 // pred_check
        %p264 = pneg %p148
      $region30: #{clip_adapter_length_regressor.1} parent=11 // pred_check_branch
        %266 = sbr.rel (%p264) target = $region32
      $region31: #{clip_adapter_length_regressor.1} parent=11 // pred_region
        _
      $region32: #{clip_adapter_length_regressor.1} parent=11 // pred_fallthru
        _
      // Predicated region
      $region33: #{clip_adapter_length_regressor.1} parent=11 // pred_check
        %p267 = pneg %p169
      $region34: #{clip_adapter_length_regressor.1} parent=11 // pred_check_branch
        %269 = sbr.rel (%p267) target = $region36
      $region35: #{clip_adapter_length_regressor.1} parent=11 // pred_region
        _
      $region36: #{clip_adapter_length_regressor.1} parent=11 // pred_fallthru
        _
      // Predicated region
      $region37: #{clip_adapter_length_regressor.1} parent=11 // pred_check
        %p270 = pneg %p190
      $region38: #{clip_adapter_length_regressor.1} parent=11 // pred_check_branch
        %272 = sbr.rel (%p270) target = $region40
      $region39: #{clip_adapter_length_regressor.1} parent=11 // pred_region
        _
      $region40: #{clip_adapter_length_regressor.1} parent=11 // pred_fallthru
        _
      // Predicated region
      $region41: #{clip_adapter_length_regressor.1} parent=11 // pred_check
        %p273 = pneg %p211
      $region42: #{clip_adapter_length_regressor.1} parent=11 // pred_check_branch
        %275 = sbr.rel (%p273) target = $region44
      $region43: #{clip_adapter_length_regressor.1} parent=11 // pred_region
        _
      $region44: #{clip_adapter_length_regressor.1} parent=11 // pred_fallthru
        _
    $region12: #{clip_adapter_length_regressor.1} parent=5 // pred_fallthru
      _
    %p276 = scmp.lt.s32.totalorder %s17, 3
    // Predicated region
    $region45: #{clip_adapter_length_regressor.1} parent=5 // pred_check
      %p277 = pneg %p276
    $region46: #{clip_adapter_length_regressor.1} parent=5 // pred_check_branch
      %279 = sbr.rel (%p277) target = $region48
    $region47: #{clip_adapter_length_regressor.1} parent=5 // pred_region
      // Predicated region
      $region49: #{clip_adapter_length_regressor.1} parent=47 // pred_check
        %p280 = pneg %p37
      $region50: #{clip_adapter_length_regressor.1} parent=47 // pred_check_branch
        %282 = sbr.rel (%p280) target = $region52
      $region51: #{clip_adapter_length_regressor.1} parent=47 // pred_region
        %s283 = smul.u32 4, %s17
        %p284 = scmp.lt.s32.totalorder %s283, 11
        %s285 = scalar_select %p284, %s283, 11
        %s286 = smul.addr %s285, 4
        %s287 = smul.addr %s286, 4
        %s288 = scalar_lea.vmem %s0, %s287
        %s289 = smul.u32 4, %s17
      $region52: #{clip_adapter_length_regressor.1} parent=47 // pred_fallthru
        _
    $region48: #{clip_adapter_length_regressor.1} parent=5 // pred_fallthru
      _
    %p290 = scmp.le.s32.totalorder 1, %s17
    %p291 = scmp.lt.s32.totalorder %s17, 4
    %p292 = pnand %p290, %p291
    %p293 = pneg %p292
    // Predicated region
    $region53: #{clip_adapter_length_regressor.1} parent=5 // pred_check
      _
    $region54: #{clip_adapter_length_regressor.1} parent=5 // pred_check_branch
      %295 = sbr.rel (%p292) target = $region56
    $region55: #{clip_adapter_length_regressor.1} parent=5 // pred_region
      %s296 = ssub.s32 %s17, 1
      %s297 = smul.u32 4, %s22
      %p298 = scmp.lt.s32.totalorder %s297, 11
      %s299 = scalar_select %p298, %s297, 11
      %s300 = smul.addr %s299, 4
      %s301 = smul.addr %s300, 4
      %s302 = scalar_lea.vmem %s0, %s301
      %p303 = pneg %p43
      %p304 = pneg %p40
      %p305 = pneg %p64
      %p306 = pneg %p61
      %p307 = pneg %p85
      %p308 = pneg %p82
      %p309 = pneg %p106
      %p310 = pneg %p103
      %p311 = pneg %p127
      %p312 = pneg %p124
      %p313 = pneg %p148
      %p314 = pneg %p145
      %p315 = pneg %p169
      %p316 = pneg %p166
      %p317 = pneg %p190
      %p318 = pneg %p187
      %p319 = pneg %p211
      %p320 = pneg %p208
      %p321 = pneg %p237
      %p322 = pneg %p234
      %s323 = smul.u32 4, %s22
      %p324 = scmp.lt.s32.totalorder %s323, 11
      %s325 = scalar_select %p324, %s323, 11
      %s326 = smul.addr %s325, 8
      %s327 = scalar_lea.vmem %s9, %s326
      %s328 = smul.u32 4, %s22
      %p329 = scmp.lt.s32.totalorder %s328, 11
      %s330 = scalar_select %p329, %s328, 11
      %s331 = smul.addr %s330, 4
      %s332 = smul.addr %s331, 4
      %s333 = scalar_lea.vmem %s0, %s332
      %s334 = smul.u32 4, %s22
      %s335 = smul.u32 4, %s22
      %p336 = scmp.lt.s32.totalorder %s335, 11
      %s337 = scalar_select %p336, %s335, 11
      %s338 = smul.addr %s337, 8
      %s339 = scalar_lea.vmem %s9, %s338
      %s340 = smul.u32 4, %s22
      %v341 = vld [vmem:[%s333] sm:$0xff]
      %v342 = vld [vmem:[%s333 + $0x8] sm:$0xff]
      %v343 = vld [vmem:[%s333 + $0x10] sm:$0xff]
      %v344 = vld [vmem:[%s333 + $0x18] sm:$0xff]
      %v345 = vld [vmem:[%s333 + $0x20] sm:$0xff]
      %v346 = vld [vmem:[%s333 + $0x28] sm:$0xff]
      %v347 = vld [vmem:[%s333 + $0x30] sm:$0xff]
      %v348 = vld [vmem:[%s333 + $0x38] sm:$0xff]
      %v349 = vunpack.c.l.bf16 %v341
      %v350 = vunpack.c.h.bf16 %v341
      %v351 = vunpack.c.l.bf16 %v342
      %v352 = vunpack.c.h.bf16 %v342
      %v353 = vunpack.c.l.bf16 %v343
      %v354 = vunpack.c.h.bf16 %v343
      %v355 = vunpack.c.l.bf16 %v344
      %v356 = vunpack.c.h.bf16 %v344
      %v357 = vunpack.c.l.bf16 %v345
      %v358 = vunpack.c.h.bf16 %v345
      %v359 = vunpack.c.l.bf16 %v346
      %v360 = vunpack.c.h.bf16 %v346
      %v361 = vunpack.c.l.bf16 %v347
      %v362 = vunpack.c.h.bf16 %v347
      %v363 = vunpack.c.l.bf16 %v348
      %v364 = vunpack.c.h.bf16 %v348
      %v365 = vld [vmem:[%s1] sm:$0xff]
      %v366 = vld [vmem:[%s1 + $0x8] sm:$0xff]
      %v367 = vld [vmem:[%s1 + $0x10] sm:$0xff]
      %v368 = vld [vmem:[%s1 + $0x18] sm:$0xff]
      %v369 = vld [vmem:[%s1 + $0x20] sm:$0xff]
      %v370 = vld [vmem:[%s1 + $0x28] sm:$0xff]
      %v371 = vld [vmem:[%s1 + $0x30] sm:$0xff]
      %v372 = vld [vmem:[%s1 + $0x38] sm:$0xff]
      %v373 = vld [vmem:[%s1 + $0x40] sm:$0xff]
      %v374 = vld [vmem:[%s1 + $0x48] sm:$0xff]
      %v375 = vld [vmem:[%s1 + $0x50] sm:$0xff]
      %v376 = vld [vmem:[%s1 + $0x58] sm:$0xff]
      %v377 = vld [vmem:[%s1 + $0x60] sm:$0xff]
      %v378 = vld [vmem:[%s1 + $0x68] sm:$0xff]
      %v379 = vld [vmem:[%s1 + $0x70] sm:$0xff]
      %v380 = vld [vmem:[%s1 + $0x78] sm:$0xff]
      %v381 = vld [vmem:[%s1 + $0x80] sm:$0xff]
      %v382 = vld [vmem:[%s1 + $0x88] sm:$0xff]
      %v383 = vld [vmem:[%s1 + $0x90] sm:$0xff]
      %v384 = vld [vmem:[%s1 + $0x98] sm:$0xff]
      %v385 = vld [vmem:[%s1 + $0xa0] sm:$0xff]
      %v386 = vld [vmem:[%s1 + $0xa8] sm:$0xff]
      %v387 = vld [vmem:[%s1 + $0xb0] sm:$0xff]
      %v388 = vld [vmem:[%s1 + $0xb8] sm:$0xff]
      %v389 = vld [vmem:[%s1 + $0xc0] sm:$0xff]
      %v390 = vld [vmem:[%s1 + $0xc8] sm:$0xff]
      %v391 = vld [vmem:[%s1 + $0xd0] sm:$0xff]
      %v392 = vld [vmem:[%s1 + $0xd8] sm:$0xff]
      %v393 = vld [vmem:[%s1 + $0xe0] sm:$0xff]
      %v394 = vld [vmem:[%s1 + $0xe8] sm:$0xff]
      %v395 = vld [vmem:[%s1 + $0xf0] sm:$0xff]
      %v396 = vld [vmem:[%s1 + $0xf8] sm:$0xff]
      %v397 = vld [vmem:[%s1 + $0x100] sm:$0xff]
      %v398 = vld [vmem:[%s1 + $0x108] sm:$0xff]
      %v399 = vld [vmem:[%s1 + $0x110] sm:$0xff]
      %v400 = vld [vmem:[%s1 + $0x118] sm:$0xff]
      %v401 = vld [vmem:[%s1 + $0x120] sm:$0xff]
      %v402 = vld [vmem:[%s1 + $0x128] sm:$0xff]
      %v403 = vld [vmem:[%s1 + $0x130] sm:$0xff]
      %v404 = vld [vmem:[%s1 + $0x138] sm:$0xff]
      %v405 = vld [vmem:[%s1 + $0x140] sm:$0xff]
      %v406 = vld [vmem:[%s1 + $0x148] sm:$0xff]
      %v407 = vld [vmem:[%s1 + $0x150] sm:$0xff]
      %v408 = vld [vmem:[%s1 + $0x158] sm:$0xff]
      %v409 = vld [vmem:[%s1 + $0x160] sm:$0xff]
      %v410 = vld [vmem:[%s1 + $0x168] sm:$0xff]
      %v411 = vld [vmem:[%s1 + $0x170] sm:$0xff]
      %v412 = vld [vmem:[%s1 + $0x178] sm:$0xff]
      %v413 = vld [vmem:[%s1 + $0x180] sm:$0xff]
      %v414 = vld [vmem:[%s1 + $0x188] sm:$0xff]
      %v415 = vld [vmem:[%s1 + $0x190] sm:$0xff]
      %v416 = vld [vmem:[%s1 + $0x198] sm:$0xff]
      %v417 = vld [vmem:[%s1 + $0x1a0] sm:$0xff]
      %v418 = vld [vmem:[%s1 + $0x1a8] sm:$0xff]
      %v419 = vld [vmem:[%s1 + $0x1b0] sm:$0xff]
      %v420 = vld [vmem:[%s1 + $0x1b8] sm:$0xff]
      %v421 = vld [vmem:[%s1 + $0x1c0] sm:$0xff]
      %v422 = vld [vmem:[%s1 + $0x1c8] sm:$0xff]
      %v423 = vld [vmem:[%s1 + $0x1d0] sm:$0xff]
      %v424 = vld [vmem:[%s1 + $0x1d8] sm:$0xff]
      %v425 = vld [vmem:[%s1 + $0x1e0] sm:$0xff]
      %v426 = vld [vmem:[%s1 + $0x1e8] sm:$0xff]
      %v427 = vld [vmem:[%s1 + $0x1f0] sm:$0xff]
      %v428 = vld [vmem:[%s1 + $0x1f8] sm:$0xff]
      %v429 = vld [vmem:[%s2] sm:$0x3]
      %v431 = vperm.slane %v429, 0
      %v432 = vperm.slane %v429, 1
      %v443 = vunpack.c.l.b16 %v341
      %v444 = vunpack.c.h.b16 %v341
      %v445 = vunpack.c.l.b16 %v342
      %v446 = vunpack.c.h.b16 %v342
      %v447 = vunpack.c.l.b16 %v343
      %v448 = vunpack.c.h.b16 %v343
      %v449 = vunpack.c.l.b16 %v344
      %v450 = vunpack.c.h.b16 %v344
      %v451 = vunpack.c.l.b16 %v345
      %v452 = vunpack.c.h.b16 %v345
      %v453 = vunpack.c.l.b16 %v346
      %v454 = vunpack.c.h.b16 %v346
      %v455 = vunpack.c.l.b16 %v347
      %v456 = vunpack.c.h.b16 %v347
      %v457 = vunpack.c.l.b16 %v348
      %v458 = vunpack.c.h.b16 %v348
      %v459 = vpack.c.b16 %v447, %v443
      %v460 = vpack.c.b16 %v448, %v444
      %v461 = vpack.c.b16 %v449, %v445
      %v462 = vpack.c.b16 %v450, %v446
      %v463 = vpack.c.b16 %v455, %v451
      %v464 = vpack.c.b16 %v456, %v452
      %v465 = vpack.c.b16 %v457, %v453
      %v466 = vpack.c.b16 %v458, %v454
      %v539 = vunpack.c.l.b16 %v365
      %v540 = vunpack.c.h.b16 %v365
      %v541 = vunpack.c.l.b16 %v366
      %v542 = vunpack.c.h.b16 %v366
      %v543 = vunpack.c.l.b16 %v367
      %v544 = vunpack.c.h.b16 %v367
      %v545 = vunpack.c.l.b16 %v368
      %v546 = vunpack.c.h.b16 %v368
      %v547 = vunpack.c.l.b16 %v369
      %v548 = vunpack.c.h.b16 %v369
      %v549 = vunpack.c.l.b16 %v370
      %v550 = vunpack.c.h.b16 %v370
      %v551 = vunpack.c.l.b16 %v371
      %v552 = vunpack.c.h.b16 %v371
      %v553 = vunpack.c.l.b16 %v372
      %v554 = vunpack.c.h.b16 %v372
      %v555 = vunpack.c.l.b16 %v373
      %v556 = vunpack.c.h.b16 %v373
      %v557 = vunpack.c.l.b16 %v374
      %v558 = vunpack.c.h.b16 %v374
      %v559 = vunpack.c.l.b16 %v375
      %v560 = vunpack.c.h.b16 %v375
      %v561 = vunpack.c.l.b16 %v376
      %v562 = vunpack.c.h.b16 %v376
      %v563 = vunpack.c.l.b16 %v377
      %v564 = vunpack.c.h.b16 %v377
      %v565 = vunpack.c.l.b16 %v378
      %v566 = vunpack.c.h.b16 %v378
      %v567 = vunpack.c.l.b16 %v379
      %v568 = vunpack.c.h.b16 %v379
      %v569 = vunpack.c.l.b16 %v380
      %v570 = vunpack.c.h.b16 %v380
      %v571 = vunpack.c.l.b16 %v381
      %v572 = vunpack.c.h.b16 %v381
      %v573 = vunpack.c.l.b16 %v382
      %v574 = vunpack.c.h.b16 %v382
      %v575 = vunpack.c.l.b16 %v383
      %v576 = vunpack.c.h.b16 %v383
      %v577 = vunpack.c.l.b16 %v384
      %v578 = vunpack.c.h.b16 %v384
      %v579 = vunpack.c.l.b16 %v385
      %v580 = vunpack.c.h.b16 %v385
      %v581 = vunpack.c.l.b16 %v386
      %v582 = vunpack.c.h.b16 %v386
      %v583 = vunpack.c.l.b16 %v387
      %v584 = vunpack.c.h.b16 %v387
      %v585 = vunpack.c.l.b16 %v388
      %v586 = vunpack.c.h.b16 %v388
      %v587 = vunpack.c.l.b16 %v389
      %v588 = vunpack.c.h.b16 %v389
      %v589 = vunpack.c.l.b16 %v390
      %v590 = vunpack.c.h.b16 %v390
      %v591 = vunpack.c.l.b16 %v391
      %v592 = vunpack.c.h.b16 %v391
      %v593 = vunpack.c.l.b16 %v392
      %v594 = vunpack.c.h.b16 %v392
      %v595 = vunpack.c.l.b16 %v393
      %v596 = vunpack.c.h.b16 %v393
      %v597 = vunpack.c.l.b16 %v394
      %v598 = vunpack.c.h.b16 %v394
      %v599 = vunpack.c.l.b16 %v395
      %v600 = vunpack.c.h.b16 %v395
      %v601 = vunpack.c.l.b16 %v396
      %v602 = vunpack.c.h.b16 %v396
      %v603 = vunpack.c.l.b16 %v397
      %v604 = vunpack.c.h.b16 %v397
      %v605 = vunpack.c.l.b16 %v398
      %v606 = vunpack.c.h.b16 %v398
      %v607 = vunpack.c.l.b16 %v399
      %v608 = vunpack.c.h.b16 %v399
      %v609 = vunpack.c.l.b16 %v400
      %v610 = vunpack.c.h.b16 %v400
      %v611 = vunpack.c.l.b16 %v401
      %v612 = vunpack.c.h.b16 %v401
      %v613 = vunpack.c.l.b16 %v402
      %v614 = vunpack.c.h.b16 %v402
      %v615 = vunpack.c.l.b16 %v403
      %v616 = vunpack.c.h.b16 %v403
      %v617 = vunpack.c.l.b16 %v404
      %v618 = vunpack.c.h.b16 %v404
      %v619 = vunpack.c.l.b16 %v405
      %v620 = vunpack.c.h.b16 %v405
      %v621 = vunpack.c.l.b16 %v406
      %v622 = vunpack.c.h.b16 %v406
      %v623 = vunpack.c.l.b16 %v407
      %v624 = vunpack.c.h.b16 %v407
      %v625 = vunpack.c.l.b16 %v408
      %v626 = vunpack.c.h.b16 %v408
      %v627 = vunpack.c.l.b16 %v409
      %v628 = vunpack.c.h.b16 %v409
      %v629 = vunpack.c.l.b16 %v410
      %v630 = vunpack.c.h.b16 %v410
      %v631 = vunpack.c.l.b16 %v411
      %v632 = vunpack.c.h.b16 %v411
      %v633 = vunpack.c.l.b16 %v412
      %v634 = vunpack.c.h.b16 %v412
      %v635 = vunpack.c.l.b16 %v413
      %v636 = vunpack.c.h.b16 %v413
      %v637 = vunpack.c.l.b16 %v414
      %v638 = vunpack.c.h.b16 %v414
      %v639 = vunpack.c.l.b16 %v415
      %v640 = vunpack.c.h.b16 %v415
      %v641 = vunpack.c.l.b16 %v416
      %v642 = vunpack.c.h.b16 %v416
      %v643 = vunpack.c.l.b16 %v417
      %v644 = vunpack.c.h.b16 %v417
      %v645 = vunpack.c.l.b16 %v418
      %v646 = vunpack.c.h.b16 %v418
      %v647 = vunpack.c.l.b16 %v419
      %v648 = vunpack.c.h.b16 %v419
      %v649 = vunpack.c.l.b16 %v420
      %v650 = vunpack.c.h.b16 %v420
      %v651 = vunpack.c.l.b16 %v421
      %v652 = vunpack.c.h.b16 %v421
      %v653 = vunpack.c.l.b16 %v422
      %v654 = vunpack.c.h.b16 %v422
      %v655 = vunpack.c.l.b16 %v423
      %v656 = vunpack.c.h.b16 %v423
      %v657 = vunpack.c.l.b16 %v424
      %v658 = vunpack.c.h.b16 %v424
      %v659 = vunpack.c.l.b16 %v425
      %v660 = vunpack.c.h.b16 %v425
      %v661 = vunpack.c.l.b16 %v426
      %v662 = vunpack.c.h.b16 %v426
      %v663 = vunpack.c.l.b16 %v427
      %v664 = vunpack.c.h.b16 %v427
      %v665 = vunpack.c.l.b16 %v428
      %v666 = vunpack.c.h.b16 %v428
      %v667 = vpack.c.b16 %v541, %v539
      %v668 = vpack.c.b16 %v542, %v540
      %v669 = vpack.c.b16 %v545, %v543
      %v670 = vpack.c.b16 %v546, %v544
      %v671 = vpack.c.b16 %v549, %v547
      %v672 = vpack.c.b16 %v550, %v548
      %v673 = vpack.c.b16 %v553, %v551
      %v674 = vpack.c.b16 %v554, %v552
      %v675 = vpack.c.b16 %v557, %v555
      %v676 = vpack.c.b16 %v558, %v556
      %v677 = vpack.c.b16 %v561, %v559
      %v678 = vpack.c.b16 %v562, %v560
      %v679 = vpack.c.b16 %v565, %v563
      %v680 = vpack.c.b16 %v566, %v564
      %v681 = vpack.c.b16 %v569, %v567
      %v682 = vpack.c.b16 %v570, %v568
      %v683 = vpack.c.b16 %v573, %v571
      %v684 = vpack.c.b16 %v574, %v572
      %v685 = vpack.c.b16 %v577, %v575
      %v686 = vpack.c.b16 %v578, %v576
      %v687 = vpack.c.b16 %v581, %v579
      %v688 = vpack.c.b16 %v582, %v580
      %v689 = vpack.c.b16 %v585, %v583
      %v690 = vpack.c.b16 %v586, %v584
      %v691 = vpack.c.b16 %v589, %v587
      %v692 = vpack.c.b16 %v590, %v588
      %v693 = vpack.c.b16 %v593, %v591
      %v694 = vpack.c.b16 %v594, %v592
      %v695 = vpack.c.b16 %v597, %v595
      %v696 = vpack.c.b16 %v598, %v596
      %v697 = vpack.c.b16 %v601, %v599
      %v698 = vpack.c.b16 %v602, %v600
      %v699 = vpack.c.b16 %v605, %v603
      %v700 = vpack.c.b16 %v606, %v604
      %v701 = vpack.c.b16 %v609, %v607
      %v702 = vpack.c.b16 %v610, %v608
      %v703 = vpack.c.b16 %v613, %v611
      %v704 = vpack.c.b16 %v614, %v612
      %v705 = vpack.c.b16 %v617, %v615
      %v706 = vpack.c.b16 %v618, %v616
      %v707 = vpack.c.b16 %v621, %v619
      %v708 = vpack.c.b16 %v622, %v620
      %v709 = vpack.c.b16 %v625, %v623
      %v710 = vpack.c.b16 %v626, %v624
      %v711 = vpack.c.b16 %v629, %v627
      %v712 = vpack.c.b16 %v630, %v628
      %v713 = vpack.c.b16 %v633, %v631
      %v714 = vpack.c.b16 %v634, %v632
      %v715 = vpack.c.b16 %v637, %v635
      %v716 = vpack.c.b16 %v638, %v636
      %v717 = vpack.c.b16 %v641, %v639
      %v718 = vpack.c.b16 %v642, %v640
      %v719 = vpack.c.b16 %v645, %v643
      %v720 = vpack.c.b16 %v646, %v644
      %v721 = vpack.c.b16 %v649, %v647
      %v722 = vpack.c.b16 %v650, %v648
      %v723 = vpack.c.b16 %v653, %v651
      %v724 = vpack.c.b16 %v654, %v652
      %v725 = vpack.c.b16 %v657, %v655
      %v726 = vpack.c.b16 %v658, %v656
      %v727 = vpack.c.b16 %v661, %v659
      %v728 = vpack.c.b16 %v662, %v660
      %v729 = vpack.c.b16 %v665, %v663
      %v730 = vpack.c.b16 %v666, %v664
      %795 = vmatpush.bf16.msra.mxu0 %v681
      %796 = vmatpush.bf16.msra.mxu0 %v679
      %797 = vmatpush.bf16.msra.mxu0 %v677
      %798 = vmatpush.bf16.msra.mxu0 %v675
      %799 = vmatpush.bf16.msra.mxu0 %v673
      %800 = vmatpush.bf16.msra.mxu0 %v671
      %801 = vmatpush.bf16.msra.mxu0 %v669
      %802 = vmatpush.bf16.msra.mxu0 %v667
      %803 = vmatmul.bf16.gmra.mxu0 %v459
      %v804 = vpop.f32.mrf.mxu0
      %v805 = vadd.f32 %v431, %v804
      %v806 = vpop.f32.mrf.mxu0
      %v807 = vadd.f32 %v431, %v806
      %808 = vmatmul.bf16.gmra.mxu0 %v463
      %v809 = vpop.f32.mrf.mxu0
      %v810 = vadd.f32 %v431, %v809
      %v811 = vpop.f32.mrf.mxu0
      %v812 = vadd.f32 %v431, %v811
      %813 = vdwg.mxu0
      %814 = vmatpush.bf16.msra.mxu0 %v697
      %815 = vmatpush.bf16.msra.mxu0 %v695
      %816 = vmatpush.bf16.msra.mxu0 %v693
      %817 = vmatpush.bf16.msra.mxu0 %v691
      %818 = vmatpush.bf16.msra.mxu0 %v689
      %819 = vmatpush.bf16.msra.mxu0 %v687
      %820 = vmatpush.bf16.msra.mxu0 %v685
      %821 = vmatpush.bf16.msra.mxu0 %v683
      %822 = vmatmul.bf16.gmra.mxu0 %v460
      %v823 = vpop.f32.mrf.mxu0
      %v824 = vadd.f32 %v805, %v823
      %v825 = vpop.f32.mrf.mxu0
      %v826 = vadd.f32 %v807, %v825
      %827 = vmatmul.bf16.gmra.mxu0 %v464
      %v828 = vpop.f32.mrf.mxu0
      %v829 = vadd.f32 %v810, %v828
      %v830 = vpop.f32.mrf.mxu0
      %v831 = vadd.f32 %v812, %v830
      %832 = vdwg.mxu0
      %833 = vmatpush.bf16.msra.mxu0 %v713
      %834 = vmatpush.bf16.msra.mxu0 %v711
      %835 = vmatpush.bf16.msra.mxu0 %v709
      %836 = vmatpush.bf16.msra.mxu0 %v707
      %837 = vmatpush.bf16.msra.mxu0 %v705
      %838 = vmatpush.bf16.msra.mxu0 %v703
      %839 = vmatpush.bf16.msra.mxu0 %v701
      %840 = vmatpush.bf16.msra.mxu0 %v699
      %841 = vmatmul.bf16.gmra.mxu0 %v461
      %v842 = vpop.f32.mrf.mxu0
      %v843 = vadd.f32 %v824, %v842
      %v844 = vpop.f32.mrf.mxu0
      %v845 = vadd.f32 %v826, %v844
      %846 = vmatmul.bf16.gmra.mxu0 %v465
      %v847 = vpop.f32.mrf.mxu0
      %v848 = vadd.f32 %v829, %v847
      %v849 = vpop.f32.mrf.mxu0
      %v850 = vadd.f32 %v831, %v849
      %851 = vdwg.mxu0
      %852 = vmatpush.bf16.msra.mxu0 %v729
      %853 = vmatpush.bf16.msra.mxu0 %v727
      %854 = vmatpush.bf16.msra.mxu0 %v725
      %855 = vmatpush.bf16.msra.mxu0 %v723
      %856 = vmatpush.bf16.msra.mxu0 %v721
      %857 = vmatpush.bf16.msra.mxu0 %v719
      %858 = vmatpush.bf16.msra.mxu0 %v717
      %859 = vmatpush.bf16.msra.mxu0 %v715
      %860 = vmatmul.bf16.gmra.mxu0 %v462
      %v861 = vpop.f32.mrf.mxu0
      %v862 = vadd.f32 %v843, %v861
      %v863 = vpop.f32.mrf.mxu0
      %v864 = vadd.f32 %v845, %v863
      %865 = vmatmul.bf16.gmra.mxu0 %v466
      %v866 = vpop.f32.mrf.mxu0
      %v867 = vadd.f32 %v848, %v866
      %v868 = vpop.f32.mrf.mxu0
      %v869 = vadd.f32 %v850, %v868
      %870 = vdwg.mxu0
      %871 = vmatpush.bf16.msra.mxu0 %v682
      %872 = vmatpush.bf16.msra.mxu0 %v680
      %873 = vmatpush.bf16.msra.mxu0 %v678
      %874 = vmatpush.bf16.msra.mxu0 %v676
      %875 = vmatpush.bf16.msra.mxu0 %v674
      %876 = vmatpush.bf16.msra.mxu0 %v672
      %877 = vmatpush.bf16.msra.mxu0 %v670
      %878 = vmatpush.bf16.msra.mxu0 %v668
      %879 = vmatmul.bf16.gmra.mxu0 %v459
      %v880 = vpop.f32.mrf.mxu0
      %v881 = vadd.f32 %v432, %v880
      %v882 = vpop.f32.mrf.mxu0
      %v883 = vadd.f32 %v432, %v882
      %884 = vmatmul.bf16.gmra.mxu0 %v463
      %v885 = vpop.f32.mrf.mxu0
      %v886 = vadd.f32 %v432, %v885
      %v887 = vpop.f32.mrf.mxu0
      %v888 = vadd.f32 %v432, %v887
      %889 = vdwg.mxu0
      %890 = vmatpush.bf16.msra.mxu0 %v698
      %891 = vmatpush.bf16.msra.mxu0 %v696
      %892 = vmatpush.bf16.msra.mxu0 %v694
      %893 = vmatpush.bf16.msra.mxu0 %v692
      %894 = vmatpush.bf16.msra.mxu0 %v690
      %895 = vmatpush.bf16.msra.mxu0 %v688
      %896 = vmatpush.bf16.msra.mxu0 %v686
      %897 = vmatpush.bf16.msra.mxu0 %v684
      %898 = vmatmul.bf16.gmra.mxu0 %v460
      %v899 = vpop.f32.mrf.mxu0
      %v900 = vadd.f32 %v881, %v899
      %v901 = vpop.f32.mrf.mxu0
      %v902 = vadd.f32 %v883, %v901
      %903 = vmatmul.bf16.gmra.mxu0 %v464
      %v904 = vpop.f32.mrf.mxu0
      %v905 = vadd.f32 %v886, %v904
      %v906 = vpop.f32.mrf.mxu0
      %v907 = vadd.f32 %v888, %v906
      %908 = vdwg.mxu0
      %909 = vmatpush.bf16.msra.mxu0 %v714
      %910 = vmatpush.bf16.msra.mxu0 %v712
      %911 = vmatpush.bf16.msra.mxu0 %v710
      %912 = vmatpush.bf16.msra.mxu0 %v708
      %913 = vmatpush.bf16.msra.mxu0 %v706
      %914 = vmatpush.bf16.msra.mxu0 %v704
      %915 = vmatpush.bf16.msra.mxu0 %v702
      %916 = vmatpush.bf16.msra.mxu0 %v700
      %917 = vmatmul.bf16.gmra.mxu0 %v461
      %v918 = vpop.f32.mrf.mxu0
      %v919 = vadd.f32 %v900, %v918
      %v920 = vpop.f32.mrf.mxu0
      %v921 = vadd.f32 %v902, %v920
      %922 = vmatmul.bf16.gmra.mxu0 %v465
      %v923 = vpop.f32.mrf.mxu0
      %v924 = vadd.f32 %v905, %v923
      %v925 = vpop.f32.mrf.mxu0
      %v926 = vadd.f32 %v907, %v925
      %927 = vdwg.mxu0
      %928 = vmatpush.bf16.msra.mxu0 %v730
      %929 = vmatpush.bf16.msra.mxu0 %v728
      %930 = vmatpush.bf16.msra.mxu0 %v726
      %931 = vmatpush.bf16.msra.mxu0 %v724
      %932 = vmatpush.bf16.msra.mxu0 %v722
      %933 = vmatpush.bf16.msra.mxu0 %v720
      %934 = vmatpush.bf16.msra.mxu0 %v718
      %935 = vmatpush.bf16.msra.mxu0 %v716
      %936 = vmatmul.bf16.gmra.mxu0 %v462
      %v937 = vpop.f32.mrf.mxu0
      %v938 = vadd.f32 %v919, %v937
      %v939 = vpop.f32.mrf.mxu0
      %v940 = vadd.f32 %v921, %v939
      %941 = vmatmul.bf16.gmra.mxu0 %v466
      %v942 = vpop.f32.mrf.mxu0
      %v943 = vadd.f32 %v924, %v942
      %v944 = vpop.f32.mrf.mxu0
      %v945 = vadd.f32 %v926, %v944
      %946 = vdwg.mxu0
      %v947 = vmax.f32 %v862, 0.0
      %v948 = vmax.f32 %v938, 0.0
      %v949 = vmax.f32 %v864, 0.0
      %v950 = vmax.f32 %v940, 0.0
      %v951 = vmax.f32 %v867, 0.0
      %v952 = vmax.f32 %v943, 0.0
      %v953 = vmax.f32 %v869, 0.0
      %v954 = vmax.f32 %v945, 0.0
      %v955 = vpack.c.bf16 %v949, %v947
      %v956 = vpack.c.bf16 %v950, %v948
      %v957 = vpack.c.bf16 %v953, %v951
      %v958 = vpack.c.bf16 %v954, %v952
      %v959 = vld [vmem:[%s3] sm:$0xff]
      %v960 = vld [vmem:[%s3 + $0x8] sm:$0xff]
      %v961 = vld [vmem:[%s3 + $0x10] sm:$0xff]
      %v962 = vld [vmem:[%s3 + $0x18] sm:$0xff]
      %v963 = vld [vmem:[%s3 + $0x20] sm:$0xff]
      %v964 = vld [vmem:[%s3 + $0x28] sm:$0xff]
      %v965 = vld [vmem:[%s3 + $0x30] sm:$0xff]
      %v966 = vld [vmem:[%s3 + $0x38] sm:$0xff]
      %v967 = vld [vmem:[%s3 + $0x40] sm:$0xff]
      %v968 = vld [vmem:[%s3 + $0x48] sm:$0xff]
      %v969 = vld [vmem:[%s3 + $0x50] sm:$0xff]
      %v970 = vld [vmem:[%s3 + $0x58] sm:$0xff]
      %v971 = vld [vmem:[%s3 + $0x60] sm:$0xff]
      %v972 = vld [vmem:[%s3 + $0x68] sm:$0xff]
      %v973 = vld [vmem:[%s3 + $0x70] sm:$0xff]
      %v974 = vld [vmem:[%s3 + $0x78] sm:$0xff]
      %v975 = vld [vmem:[%s3 + $0x80] sm:$0xff]
      %v976 = vld [vmem:[%s3 + $0x88] sm:$0xff]
      %v977 = vld [vmem:[%s3 + $0x90] sm:$0xff]
      %v978 = vld [vmem:[%s3 + $0x98] sm:$0xff]
      %v979 = vld [vmem:[%s3 + $0xa0] sm:$0xff]
      %v980 = vld [vmem:[%s3 + $0xa8] sm:$0xff]
      %v981 = vld [vmem:[%s3 + $0xb0] sm:$0xff]
      %v982 = vld [vmem:[%s3 + $0xb8] sm:$0xff]
      %v983 = vld [vmem:[%s3 + $0xc0] sm:$0xff]
      %v984 = vld [vmem:[%s3 + $0xc8] sm:$0xff]
      %v985 = vld [vmem:[%s3 + $0xd0] sm:$0xff]
      %v986 = vld [vmem:[%s3 + $0xd8] sm:$0xff]
      %v987 = vld [vmem:[%s3 + $0xe0] sm:$0xff]
      %v988 = vld [vmem:[%s3 + $0xe8] sm:$0xff]
      %v989 = vld [vmem:[%s3 + $0xf0] sm:$0xff]
      %v990 = vld [vmem:[%s3 + $0xf8] sm:$0xff]
      %v991 = vld [vmem:[%s3 + $0x100] sm:$0xff]
      %v992 = vld [vmem:[%s3 + $0x108] sm:$0xff]
      %v993 = vld [vmem:[%s3 + $0x110] sm:$0xff]
      %v994 = vld [vmem:[%s3 + $0x118] sm:$0xff]
      %v995 = vld [vmem:[%s3 + $0x120] sm:$0xff]
      %v996 = vld [vmem:[%s3 + $0x128] sm:$0xff]
      %v997 = vld [vmem:[%s3 + $0x130] sm:$0xff]
      %v998 = vld [vmem:[%s3 + $0x138] sm:$0xff]
      %v999 = vld [vmem:[%s3 + $0x140] sm:$0xff]
      %v1000 = vld [vmem:[%s3 + $0x148] sm:$0xff]
      %v1001 = vld [vmem:[%s3 + $0x150] sm:$0xff]
      %v1002 = vld [vmem:[%s3 + $0x158] sm:$0xff]
      %v1003 = vld [vmem:[%s3 + $0x160] sm:$0xff]
      %v1004 = vld [vmem:[%s3 + $0x168] sm:$0xff]
      %v1005 = vld [vmem:[%s3 + $0x170] sm:$0xff]
      %v1006 = vld [vmem:[%s3 + $0x178] sm:$0xff]
      %v1007 = vld [vmem:[%s3 + $0x180] sm:$0xff]
      %v1008 = vld [vmem:[%s3 + $0x188] sm:$0xff]
      %v1009 = vld [vmem:[%s3 + $0x190] sm:$0xff]
      %v1010 = vld [vmem:[%s3 + $0x198] sm:$0xff]
      %v1011 = vld [vmem:[%s3 + $0x1a0] sm:$0xff]
      %v1012 = vld [vmem:[%s3 + $0x1a8] sm:$0xff]
      %v1013 = vld [vmem:[%s3 + $0x1b0] sm:$0xff]
      %v1014 = vld [vmem:[%s3 + $0x1b8] sm:$0xff]
      %v1015 = vld [vmem:[%s3 + $0x1c0] sm:$0xff]
      %v1016 = vld [vmem:[%s3 + $0x1c8] sm:$0xff]
      %v1017 = vld [vmem:[%s3 + $0x1d0] sm:$0xff]
      %v1018 = vld [vmem:[%s3 + $0x1d8] sm:$0xff]
      %v1019 = vld [vmem:[%s3 + $0x1e0] sm:$0xff]
      %v1020 = vld [vmem:[%s3 + $0x1e8] sm:$0xff]
      %v1021 = vld [vmem:[%s3 + $0x1f0] sm:$0xff]
      %v1022 = vld [vmem:[%s3 + $0x1f8] sm:$0xff]
      %v1023 = vld [vmem:[%s4] sm:$0xf]
      %v1025 = vperm.slane %v1023, 0
      %v1026 = vperm.slane %v1023, 1
      %v1027 = vperm.slane %v1023, 2
      %v1028 = vperm.slane %v1023, 3
      %v1097 = vunpack.c.l.b16 %v959
      %v1098 = vunpack.c.h.b16 %v959
      %v1099 = vunpack.c.l.b16 %v960
      %v1100 = vunpack.c.h.b16 %v960
      %v1101 = vunpack.c.l.b16 %v961
      %v1102 = vunpack.c.h.b16 %v961
      %v1103 = vunpack.c.l.b16 %v962
      %v1104 = vunpack.c.h.b16 %v962
      %v1105 = vunpack.c.l.b16 %v963
      %v1106 = vunpack.c.h.b16 %v963
      %v1107 = vunpack.c.l.b16 %v964
      %v1108 = vunpack.c.h.b16 %v964
      %v1109 = vunpack.c.l.b16 %v965
      %v1110 = vunpack.c.h.b16 %v965
      %v1111 = vunpack.c.l.b16 %v966
      %v1112 = vunpack.c.h.b16 %v966
      %v1113 = vunpack.c.l.b16 %v967
      %v1114 = vunpack.c.h.b16 %v967
      %v1115 = vunpack.c.l.b16 %v968
      %v1116 = vunpack.c.h.b16 %v968
      %v1117 = vunpack.c.l.b16 %v969
      %v1118 = vunpack.c.h.b16 %v969
      %v1119 = vunpack.c.l.b16 %v970
      %v1120 = vunpack.c.h.b16 %v970
      %v1121 = vunpack.c.l.b16 %v971
      %v1122 = vunpack.c.h.b16 %v971
      %v1123 = vunpack.c.l.b16 %v972
      %v1124 = vunpack.c.h.b16 %v972
      %v1125 = vunpack.c.l.b16 %v973
      %v1126 = vunpack.c.h.b16 %v973
      %v1127 = vunpack.c.l.b16 %v974
      %v1128 = vunpack.c.h.b16 %v974
      %v1129 = vunpack.c.l.b16 %v975
      %v1130 = vunpack.c.h.b16 %v975
      %v1131 = vunpack.c.l.b16 %v976
      %v1132 = vunpack.c.h.b16 %v976
      %v1133 = vunpack.c.l.b16 %v977
      %v1134 = vunpack.c.h.b16 %v977
      %v1135 = vunpack.c.l.b16 %v978
      %v1136 = vunpack.c.h.b16 %v978
      %v1137 = vunpack.c.l.b16 %v979
      %v1138 = vunpack.c.h.b16 %v979
      %v1139 = vunpack.c.l.b16 %v980
      %v1140 = vunpack.c.h.b16 %v980
      %v1141 = vunpack.c.l.b16 %v981
      %v1142 = vunpack.c.h.b16 %v981
      %v1143 = vunpack.c.l.b16 %v982
      %v1144 = vunpack.c.h.b16 %v982
      %v1145 = vunpack.c.l.b16 %v983
      %v1146 = vunpack.c.h.b16 %v983
      %v1147 = vunpack.c.l.b16 %v984
      %v1148 = vunpack.c.h.b16 %v984
      %v1149 = vunpack.c.l.b16 %v985
      %v1150 = vunpack.c.h.b16 %v985
      %v1151 = vunpack.c.l.b16 %v986
      %v1152 = vunpack.c.h.b16 %v986
      %v1153 = vunpack.c.l.b16 %v987
      %v1154 = vunpack.c.h.b16 %v987
      %v1155 = vunpack.c.l.b16 %v988
      %v1156 = vunpack.c.h.b16 %v988
      %v1157 = vunpack.c.l.b16 %v989
      %v1158 = vunpack.c.h.b16 %v989
      %v1159 = vunpack.c.l.b16 %v990
      %v1160 = vunpack.c.h.b16 %v990
      %v1161 = vunpack.c.l.b16 %v991
      %v1162 = vunpack.c.h.b16 %v991
      %v1163 = vunpack.c.l.b16 %v992
      %v1164 = vunpack.c.h.b16 %v992
      %v1165 = vunpack.c.l.b16 %v993
      %v1166 = vunpack.c.h.b16 %v993
      %v1167 = vunpack.c.l.b16 %v994
      %v1168 = vunpack.c.h.b16 %v994
      %v1169 = vunpack.c.l.b16 %v995
      %v1170 = vunpack.c.h.b16 %v995
      %v1171 = vunpack.c.l.b16 %v996
      %v1172 = vunpack.c.h.b16 %v996
      %v1173 = vunpack.c.l.b16 %v997
      %v1174 = vunpack.c.h.b16 %v997
      %v1175 = vunpack.c.l.b16 %v998
      %v1176 = vunpack.c.h.b16 %v998
      %v1177 = vunpack.c.l.b16 %v999
      %v1178 = vunpack.c.h.b16 %v999
      %v1179 = vunpack.c.l.b16 %v1000
      %v1180 = vunpack.c.h.b16 %v1000
      %v1181 = vunpack.c.l.b16 %v1001
      %v1182 = vunpack.c.h.b16 %v1001
      %v1183 = vunpack.c.l.b16 %v1002
      %v1184 = vunpack.c.h.b16 %v1002
      %v1185 = vunpack.c.l.b16 %v1003
      %v1186 = vunpack.c.h.b16 %v1003
      %v1187 = vunpack.c.l.b16 %v1004
      %v1188 = vunpack.c.h.b16 %v1004
      %v1189 = vunpack.c.l.b16 %v1005
      %v1190 = vunpack.c.h.b16 %v1005
      %v1191 = vunpack.c.l.b16 %v1006
      %v1192 = vunpack.c.h.b16 %v1006
      %v1193 = vunpack.c.l.b16 %v1007
      %v1194 = vunpack.c.h.b16 %v1007
      %v1195 = vunpack.c.l.b16 %v1008
      %v1196 = vunpack.c.h.b16 %v1008
      %v1197 = vunpack.c.l.b16 %v1009
      %v1198 = vunpack.c.h.b16 %v1009
      %v1199 = vunpack.c.l.b16 %v1010
      %v1200 = vunpack.c.h.b16 %v1010
      %v1201 = vunpack.c.l.b16 %v1011
      %v1202 = vunpack.c.h.b16 %v1011
      %v1203 = vunpack.c.l.b16 %v1012
      %v1204 = vunpack.c.h.b16 %v1012
      %v1205 = vunpack.c.l.b16 %v1013
      %v1206 = vunpack.c.h.b16 %v1013
      %v1207 = vunpack.c.l.b16 %v1014
      %v1208 = vunpack.c.h.b16 %v1014
      %v1209 = vunpack.c.l.b16 %v1015
      %v1210 = vunpack.c.h.b16 %v1015
      %v1211 = vunpack.c.l.b16 %v1016
      %v1212 = vunpack.c.h.b16 %v1016
      %v1213 = vunpack.c.l.b16 %v1017
      %v1214 = vunpack.c.h.b16 %v1017
      %v1215 = vunpack.c.l.b16 %v1018
      %v1216 = vunpack.c.h.b16 %v1018
      %v1217 = vunpack.c.l.b16 %v1019
      %v1218 = vunpack.c.h.b16 %v1019
      %v1219 = vunpack.c.l.b16 %v1020
      %v1220 = vunpack.c.h.b16 %v1020
      %v1221 = vunpack.c.l.b16 %v1021
      %v1222 = vunpack.c.h.b16 %v1021
      %v1223 = vunpack.c.l.b16 %v1022
      %v1224 = vunpack.c.h.b16 %v1022
      %v1225 = vpack.c.b16 %v1101, %v1097
      %v1226 = vpack.c.b16 %v1102, %v1098
      %v1227 = vpack.c.b16 %v1103, %v1099
      %v1228 = vpack.c.b16 %v1104, %v1100
      %v1229 = vpack.c.b16 %v1109, %v1105
      %v1230 = vpack.c.b16 %v1110, %v1106
      %v1231 = vpack.c.b16 %v1111, %v1107
      %v1232 = vpack.c.b16 %v1112, %v1108
      %v1233 = vpack.c.b16 %v1117, %v1113
      %v1234 = vpack.c.b16 %v1118, %v1114
      %v1235 = vpack.c.b16 %v1119, %v1115
      %v1236 = vpack.c.b16 %v1120, %v1116
      %v1237 = vpack.c.b16 %v1125, %v1121
      %v1238 = vpack.c.b16 %v1126, %v1122
      %v1239 = vpack.c.b16 %v1127, %v1123
      %v1240 = vpack.c.b16 %v1128, %v1124
      %v1241 = vpack.c.b16 %v1133, %v1129
      %v1242 = vpack.c.b16 %v1134, %v1130
      %v1243 = vpack.c.b16 %v1135, %v1131
      %v1244 = vpack.c.b16 %v1136, %v1132
      %v1245 = vpack.c.b16 %v1141, %v1137
      %v1246 = vpack.c.b16 %v1142, %v1138
      %v1247 = vpack.c.b16 %v1143, %v1139
      %v1248 = vpack.c.b16 %v1144, %v1140
      %v1249 = vpack.c.b16 %v1149, %v1145
      %v1250 = vpack.c.b16 %v1150, %v1146
      %v1251 = vpack.c.b16 %v1151, %v1147
      %v1252 = vpack.c.b16 %v1152, %v1148
      %v1253 = vpack.c.b16 %v1157, %v1153
      %v1254 = vpack.c.b16 %v1158, %v1154
      %v1255 = vpack.c.b16 %v1159, %v1155
      %v1256 = vpack.c.b16 %v1160, %v1156
      %v1257 = vpack.c.b16 %v1165, %v1161
      %v1258 = vpack.c.b16 %v1166, %v1162
      %v1259 = vpack.c.b16 %v1167, %v1163
      %v1260 = vpack.c.b16 %v1168, %v1164
      %v1261 = vpack.c.b16 %v1173, %v1169
      %v1262 = vpack.c.b16 %v1174, %v1170
      %v1263 = vpack.c.b16 %v1175, %v1171
      %v1264 = vpack.c.b16 %v1176, %v1172
      %v1265 = vpack.c.b16 %v1181, %v1177
      %v1266 = vpack.c.b16 %v1182, %v1178
      %v1267 = vpack.c.b16 %v1183, %v1179
      %v1268 = vpack.c.b16 %v1184, %v1180
      %v1269 = vpack.c.b16 %v1189, %v1185
      %v1270 = vpack.c.b16 %v1190, %v1186
      %v1271 = vpack.c.b16 %v1191, %v1187
      %v1272 = vpack.c.b16 %v1192, %v1188
      %v1273 = vpack.c.b16 %v1197, %v1193
      %v1274 = vpack.c.b16 %v1198, %v1194
      %v1275 = vpack.c.b16 %v1199, %v1195
      %v1276 = vpack.c.b16 %v1200, %v1196
      %v1277 = vpack.c.b16 %v1205, %v1201
      %v1278 = vpack.c.b16 %v1206, %v1202
      %v1279 = vpack.c.b16 %v1207, %v1203
      %v1280 = vpack.c.b16 %v1208, %v1204
      %v1281 = vpack.c.b16 %v1213, %v1209
      %v1282 = vpack.c.b16 %v1214, %v1210
      %v1283 = vpack.c.b16 %v1215, %v1211
      %v1284 = vpack.c.b16 %v1216, %v1212
      %v1285 = vpack.c.b16 %v1221, %v1217
      %v1286 = vpack.c.b16 %v1222, %v1218
      %v1287 = vpack.c.b16 %v1223, %v1219
      %v1288 = vpack.c.b16 %v1224, %v1220
      %1353 = vmatpush.bf16.msra.mxu0 %v1253
      %1354 = vmatpush.bf16.msra.mxu0 %v1249
      %1355 = vmatpush.bf16.msra.mxu0 %v1245
      %1356 = vmatpush.bf16.msra.mxu0 %v1241
      %1357 = vmatpush.bf16.msra.mxu0 %v1237
      %1358 = vmatpush.bf16.msra.mxu0 %v1233
      %1359 = vmatpush.bf16.msra.mxu0 %v1229
      %1360 = vmatpush.bf16.msra.mxu0 %v1225
      %1361 = vmatmul.bf16.gmra.mxu0 %v955
      %v1362 = vpop.f32.mrf.mxu0
      %v1363 = vadd.f32 %v1025, %v1362
      %v1364 = vpop.f32.mrf.mxu0
      %v1365 = vadd.f32 %v1025, %v1364
      %1366 = vmatmul.bf16.gmra.mxu0 %v957
      %v1367 = vpop.f32.mrf.mxu0
      %v1368 = vadd.f32 %v1025, %v1367
      %v1369 = vpop.f32.mrf.mxu0
      %v1370 = vadd.f32 %v1025, %v1369
      %1371 = vdwg.mxu0
      %1372 = vmatpush.bf16.msra.mxu0 %v1285
      %1373 = vmatpush.bf16.msra.mxu0 %v1281
      %1374 = vmatpush.bf16.msra.mxu0 %v1277
      %1375 = vmatpush.bf16.msra.mxu0 %v1273
      %1376 = vmatpush.bf16.msra.mxu0 %v1269
      %1377 = vmatpush.bf16.msra.mxu0 %v1265
      %1378 = vmatpush.bf16.msra.mxu0 %v1261
      %1379 = vmatpush.bf16.msra.mxu0 %v1257
      %1380 = vmatmul.bf16.gmra.mxu0 %v956
      %v1381 = vpop.f32.mrf.mxu0
      %v1382 = vadd.f32 %v1363, %v1381
      %v1383 = vpop.f32.mrf.mxu0
      %v1384 = vadd.f32 %v1365, %v1383
      %1385 = vmatmul.bf16.gmra.mxu0 %v958
      %v1386 = vpop.f32.mrf.mxu0
      %v1387 = vadd.f32 %v1368, %v1386
      %v1388 = vpop.f32.mrf.mxu0
      %v1389 = vadd.f32 %v1370, %v1388
      %1390 = vdwg.mxu0
      %1391 = vmatpush.bf16.msra.mxu0 %v1254
      %1392 = vmatpush.bf16.msra.mxu0 %v1250
      %1393 = vmatpush.bf16.msra.mxu0 %v1246
      %1394 = vmatpush.bf16.msra.mxu0 %v1242
      %1395 = vmatpush.bf16.msra.mxu0 %v1238
      %1396 = vmatpush.bf16.msra.mxu0 %v1234
      %1397 = vmatpush.bf16.msra.mxu0 %v1230
      %1398 = vmatpush.bf16.msra.mxu0 %v1226
      %1399 = vmatmul.bf16.gmra.mxu0 %v955
      %v1400 = vpop.f32.mrf.mxu0
      %v1401 = vadd.f32 %v1026, %v1400
      %v1402 = vpop.f32.mrf.mxu0
      %v1403 = vadd.f32 %v1026, %v1402
      %1404 = vmatmul.bf16.gmra.mxu0 %v957
      %v1405 = vpop.f32.mrf.mxu0
      %v1406 = vadd.f32 %v1026, %v1405
      %v1407 = vpop.f32.mrf.mxu0
      %v1408 = vadd.f32 %v1026, %v1407
      %1409 = vdwg.mxu0
      %1410 = vmatpush.bf16.msra.mxu0 %v1286
      %1411 = vmatpush.bf16.msra.mxu0 %v1282
      %1412 = vmatpush.bf16.msra.mxu0 %v1278
      %1413 = vmatpush.bf16.msra.mxu0 %v1274
      %1414 = vmatpush.bf16.msra.mxu0 %v1270
      %1415 = vmatpush.bf16.msra.mxu0 %v1266
      %1416 = vmatpush.bf16.msra.mxu0 %v1262
      %1417 = vmatpush.bf16.msra.mxu0 %v1258
      %1418 = vmatmul.bf16.gmra.mxu0 %v956
      %v1419 = vpop.f32.mrf.mxu0
      %v1420 = vadd.f32 %v1401, %v1419
      %v1421 = vpop.f32.mrf.mxu0
      %v1422 = vadd.f32 %v1403, %v1421
      %1423 = vmatmul.bf16.gmra.mxu0 %v958
      %v1424 = vpop.f32.mrf.mxu0
      %v1425 = vadd.f32 %v1406, %v1424
      %v1426 = vpop.f32.mrf.mxu0
      %v1427 = vadd.f32 %v1408, %v1426
      %1428 = vdwg.mxu0
      %1429 = vmatpush.bf16.msra.mxu0 %v1255
      %1430 = vmatpush.bf16.msra.mxu0 %v1251
      %1431 = vmatpush.bf16.msra.mxu0 %v1247
      %1432 = vmatpush.bf16.msra.mxu0 %v1243
      %1433 = vmatpush.bf16.msra.mxu0 %v1239
      %1434 = vmatpush.bf16.msra.mxu0 %v1235
      %1435 = vmatpush.bf16.msra.mxu0 %v1231
      %1436 = vmatpush.bf16.msra.mxu0 %v1227
      %1437 = vmatmul.bf16.gmra.mxu0 %v955
      %v1438 = vpop.f32.mrf.mxu0
      %v1439 = vadd.f32 %v1027, %v1438
      %v1440 = vpop.f32.mrf.mxu0
      %v1441 = vadd.f32 %v1027, %v1440
      %1442 = vmatmul.bf16.gmra.mxu0 %v957
      %v1443 = vpop.f32.mrf.mxu0
      %v1444 = vadd.f32 %v1027, %v1443
      %v1445 = vpop.f32.mrf.mxu0
      %v1446 = vadd.f32 %v1027, %v1445
      %1447 = vdwg.mxu0
      %1448 = vmatpush.bf16.msra.mxu0 %v1287
      %1449 = vmatpush.bf16.msra.mxu0 %v1283
      %1450 = vmatpush.bf16.msra.mxu0 %v1279
      %1451 = vmatpush.bf16.msra.mxu0 %v1275
      %1452 = vmatpush.bf16.msra.mxu0 %v1271
      %1453 = vmatpush.bf16.msra.mxu0 %v1267
      %1454 = vmatpush.bf16.msra.mxu0 %v1263
      %1455 = vmatpush.bf16.msra.mxu0 %v1259
      %1456 = vmatmul.bf16.gmra.mxu0 %v956
      %v1457 = vpop.f32.mrf.mxu0
      %v1458 = vadd.f32 %v1439, %v1457
      %v1459 = vpop.f32.mrf.mxu0
      %v1460 = vadd.f32 %v1441, %v1459
      %1461 = vmatmul.bf16.gmra.mxu0 %v958
      %v1462 = vpop.f32.mrf.mxu0
      %v1463 = vadd.f32 %v1444, %v1462
      %v1464 = vpop.f32.mrf.mxu0
      %v1465 = vadd.f32 %v1446, %v1464
      %1466 = vdwg.mxu0
      %1467 = vmatpush.bf16.msra.mxu0 %v1256
      %1468 = vmatpush.bf16.msra.mxu0 %v1252
      %1469 = vmatpush.bf16.msra.mxu0 %v1248
      %1470 = vmatpush.bf16.msra.mxu0 %v1244
      %1471 = vmatpush.bf16.msra.mxu0 %v1240
      %1472 = vmatpush.bf16.msra.mxu0 %v1236
      %1473 = vmatpush.bf16.msra.mxu0 %v1232
      %1474 = vmatpush.bf16.msra.mxu0 %v1228
      %1475 = vmatmul.bf16.gmra.mxu0 %v955
      %v1476 = vpop.f32.mrf.mxu0
      %v1477 = vadd.f32 %v1028, %v1476
      %v1478 = vpop.f32.mrf.mxu0
      %v1479 = vadd.f32 %v1028, %v1478
      %1480 = vmatmul.bf16.gmra.mxu0 %v957
      %v1481 = vpop.f32.mrf.mxu0
      %v1482 = vadd.f32 %v1028, %v1481
      %v1483 = vpop.f32.mrf.mxu0
      %v1484 = vadd.f32 %v1028, %v1483
      %1485 = vdwg.mxu0
      %1486 = vmatpush.bf16.msra.mxu0 %v1288
      %1487 = vmatpush.bf16.msra.mxu0 %v1284
      %1488 = vmatpush.bf16.msra.mxu0 %v1280
      %1489 = vmatpush.bf16.msra.mxu0 %v1276
      %1490 = vmatpush.bf16.msra.mxu0 %v1272
      %1491 = vmatpush.bf16.msra.mxu0 %v1268
      %1492 = vmatpush.bf16.msra.mxu0 %v1264
      %1493 = vmatpush.bf16.msra.mxu0 %v1260
      %1494 = vmatmul.bf16.gmra.mxu0 %v956
      %v1495 = vpop.f32.mrf.mxu0
      %v1496 = vadd.f32 %v1477, %v1495
      %v1497 = vpop.f32.mrf.mxu0
      %v1498 = vadd.f32 %v1479, %v1497
      %1499 = vmatmul.bf16.gmra.mxu0 %v958
      %v1500 = vpop.f32.mrf.mxu0
      %v1501 = vadd.f32 %v1482, %v1500
      %v1502 = vpop.f32.mrf.mxu0
      %v1503 = vadd.f32 %v1484, %v1502
      %1504 = vdwg.mxu0
      %v1505 = vadd.f32 %v349, %v1382
      %v1506 = vadd.f32 %v350, %v1420
      %v1507 = vadd.f32 %v351, %v1458
      %v1508 = vadd.f32 %v352, %v1496
      %v1509 = vadd.f32 %v353, %v1384
      %v1510 = vadd.f32 %v354, %v1422
      %v1511 = vadd.f32 %v355, %v1460
      %v1512 = vadd.f32 %v356, %v1498
      %v1513 = vadd.f32 %v357, %v1387
      %v1514 = vadd.f32 %v358, %v1425
      %v1515 = vadd.f32 %v359, %v1463
      %v1516 = vadd.f32 %v360, %v1501
      %v1517 = vadd.f32 %v361, %v1389
      %v1518 = vadd.f32 %v362, %v1427
      %v1519 = vadd.f32 %v363, %v1465
      %v1520 = vadd.f32 %v364, %v1503
      %v1521 = vpack.c.bf16 %v1509, %v1505
      %v1522 = vpack.c.bf16 %v1510, %v1506
      %v1523 = vpack.c.bf16 %v1511, %v1507
      %v1524 = vpack.c.bf16 %v1512, %v1508
      %v1525 = vpack.c.bf16 %v1517, %v1513
      %v1526 = vpack.c.bf16 %v1518, %v1514
      %v1527 = vpack.c.bf16 %v1519, %v1515
      %v1528 = vpack.c.bf16 %v1520, %v1516
      %v1529 = vld [vmem:[%s5] sm:$0xff]
      %v1530 = vld [vmem:[%s5 + $0x8] sm:$0xff]
      %v1531 = vld [vmem:[%s5 + $0x10] sm:$0xff]
      %v1532 = vld [vmem:[%s5 + $0x18] sm:$0xff]
      %v1533 = vld [vmem:[%s5 + $0x20] sm:$0xff]
      %v1534 = vld [vmem:[%s5 + $0x28] sm:$0xff]
      %v1535 = vld [vmem:[%s5 + $0x30] sm:$0xff]
      %v1536 = vld [vmem:[%s5 + $0x38] sm:$0xff]
      %v1537 = vld [vmem:[%s5 + $0x40] sm:$0xff]
      %v1538 = vld [vmem:[%s5 + $0x48] sm:$0xff]
      %v1539 = vld [vmem:[%s5 + $0x50] sm:$0xff]
      %v1540 = vld [vmem:[%s5 + $0x58] sm:$0xff]
      %v1541 = vld [vmem:[%s5 + $0x60] sm:$0xff]
      %v1542 = vld [vmem:[%s5 + $0x68] sm:$0xff]
      %v1543 = vld [vmem:[%s5 + $0x70] sm:$0xff]
      %v1544 = vld [vmem:[%s5 + $0x78] sm:$0xff]
      %v1545 = vld [vmem:[%s5 + $0x80] sm:$0xff]
      %v1546 = vld [vmem:[%s5 + $0x88] sm:$0xff]
      %v1547 = vld [vmem:[%s5 + $0x90] sm:$0xff]
      %v1548 = vld [vmem:[%s5 + $0x98] sm:$0xff]
      %v1549 = vld [vmem:[%s5 + $0xa0] sm:$0xff]
      %v1550 = vld [vmem:[%s5 + $0xa8] sm:$0xff]
      %v1551 = vld [vmem:[%s5 + $0xb0] sm:$0xff]
      %v1552 = vld [vmem:[%s5 + $0xb8] sm:$0xff]
      %v1553 = vld [vmem:[%s5 + $0xc0] sm:$0xff]
      %v1554 = vld [vmem:[%s5 + $0xc8] sm:$0xff]
      %v1555 = vld [vmem:[%s5 + $0xd0] sm:$0xff]
      %v1556 = vld [vmem:[%s5 + $0xd8] sm:$0xff]
      %v1557 = vld [vmem:[%s5 + $0xe0] sm:$0xff]
      %v1558 = vld [vmem:[%s5 + $0xe8] sm:$0xff]
      %v1559 = vld [vmem:[%s5 + $0xf0] sm:$0xff]
      %v1560 = vld [vmem:[%s5 + $0xf8] sm:$0xff]
      %v1561 = vld [vmem:[%s5 + $0x100] sm:$0xff]
      %v1562 = vld [vmem:[%s5 + $0x108] sm:$0xff]
      %v1563 = vld [vmem:[%s5 + $0x110] sm:$0xff]
      %v1564 = vld [vmem:[%s5 + $0x118] sm:$0xff]
      %v1565 = vld [vmem:[%s5 + $0x120] sm:$0xff]
      %v1566 = vld [vmem:[%s5 + $0x128] sm:$0xff]
      %v1567 = vld [vmem:[%s5 + $0x130] sm:$0xff]
      %v1568 = vld [vmem:[%s5 + $0x138] sm:$0xff]
      %v1569 = vld [vmem:[%s5 + $0x140] sm:$0xff]
      %v1570 = vld [vmem:[%s5 + $0x148] sm:$0xff]
      %v1571 = vld [vmem:[%s5 + $0x150] sm:$0xff]
      %v1572 = vld [vmem:[%s5 + $0x158] sm:$0xff]
      %v1573 = vld [vmem:[%s5 + $0x160] sm:$0xff]
      %v1574 = vld [vmem:[%s5 + $0x168] sm:$0xff]
      %v1575 = vld [vmem:[%s5 + $0x170] sm:$0xff]
      %v1576 = vld [vmem:[%s5 + $0x178] sm:$0xff]
      %v1577 = vld [vmem:[%s5 + $0x180] sm:$0xff]
      %v1578 = vld [vmem:[%s5 + $0x188] sm:$0xff]
      %v1579 = vld [vmem:[%s5 + $0x190] sm:$0xff]
      %v1580 = vld [vmem:[%s5 + $0x198] sm:$0xff]
      %v1581 = vld [vmem:[%s5 + $0x1a0] sm:$0xff]
      %v1582 = vld [vmem:[%s5 + $0x1a8] sm:$0xff]
      %v1583 = vld [vmem:[%s5 + $0x1b0] sm:$0xff]
      %v1584 = vld [vmem:[%s5 + $0x1b8] sm:$0xff]
      %v1585 = vld [vmem:[%s5 + $0x1c0] sm:$0xff]
      %v1586 = vld [vmem:[%s5 + $0x1c8] sm:$0xff]
      %v1587 = vld [vmem:[%s5 + $0x1d0] sm:$0xff]
      %v1588 = vld [vmem:[%s5 + $0x1d8] sm:$0xff]
      %v1589 = vld [vmem:[%s5 + $0x1e0] sm:$0xff]
      %v1590 = vld [vmem:[%s5 + $0x1e8] sm:$0xff]
      %v1591 = vld [vmem:[%s5 + $0x1f0] sm:$0xff]
      %v1592 = vld [vmem:[%s5 + $0x1f8] sm:$0xff]
      %v1593 = vld [vmem:[%s5 + $0x200] sm:$0xff]
      %v1594 = vld [vmem:[%s5 + $0x208] sm:$0xff]
      %v1595 = vld [vmem:[%s5 + $0x210] sm:$0xff]
      %v1596 = vld [vmem:[%s5 + $0x218] sm:$0xff]
      %v1597 = vld [vmem:[%s5 + $0x220] sm:$0xff]
      %v1598 = vld [vmem:[%s5 + $0x228] sm:$0xff]
      %v1599 = vld [vmem:[%s5 + $0x230] sm:$0xff]
      %v1600 = vld [vmem:[%s5 + $0x238] sm:$0xff]
      %v1601 = vld [vmem:[%s5 + $0x240] sm:$0xff]
      %v1602 = vld [vmem:[%s5 + $0x248] sm:$0xff]
      %v1603 = vld [vmem:[%s5 + $0x250] sm:$0xff]
      %v1604 = vld [vmem:[%s5 + $0x258] sm:$0xff]
      %v1605 = vld [vmem:[%s5 + $0x260] sm:$0xff]
      %v1606 = vld [vmem:[%s5 + $0x268] sm:$0xff]
      %v1607 = vld [vmem:[%s5 + $0x270] sm:$0xff]
      %v1608 = vld [vmem:[%s5 + $0x278] sm:$0xff]
      %v1609 = vld [vmem:[%s5 + $0x280] sm:$0xff]
      %v1610 = vld [vmem:[%s5 + $0x288] sm:$0xff]
      %v1611 = vld [vmem:[%s5 + $0x290] sm:$0xff]
      %v1612 = vld [vmem:[%s5 + $0x298] sm:$0xff]
      %v1613 = vld [vmem:[%s5 + $0x2a0] sm:$0xff]
      %v1614 = vld [vmem:[%s5 + $0x2a8] sm:$0xff]
      %v1615 = vld [vmem:[%s5 + $0x2b0] sm:$0xff]
      %v1616 = vld [vmem:[%s5 + $0x2b8] sm:$0xff]
      %v1617 = vld [vmem:[%s5 + $0x2c0] sm:$0xff]
      %v1618 = vld [vmem:[%s5 + $0x2c8] sm:$0xff]
      %v1619 = vld [vmem:[%s5 + $0x2d0] sm:$0xff]
      %v1620 = vld [vmem:[%s5 + $0x2d8] sm:$0xff]
      %v1621 = vld [vmem:[%s5 + $0x2e0] sm:$0xff]
      %v1622 = vld [vmem:[%s5 + $0x2e8] sm:$0xff]
      %v1623 = vld [vmem:[%s5 + $0x2f0] sm:$0xff]
      %v1624 = vld [vmem:[%s5 + $0x2f8] sm:$0xff]
      %v1625 = vld [vmem:[%s5 + $0x300] sm:$0xff]
      %v1626 = vld [vmem:[%s5 + $0x308] sm:$0xff]
      %v1627 = vld [vmem:[%s5 + $0x310] sm:$0xff]
      %v1628 = vld [vmem:[%s5 + $0x318] sm:$0xff]
      %v1629 = vld [vmem:[%s5 + $0x320] sm:$0xff]
      %v1630 = vld [vmem:[%s5 + $0x328] sm:$0xff]
      %v1631 = vld [vmem:[%s5 + $0x330] sm:$0xff]
      %v1632 = vld [vmem:[%s5 + $0x338] sm:$0xff]
      %v1633 = vld [vmem:[%s5 + $0x340] sm:$0xff]
      %v1634 = vld [vmem:[%s5 + $0x348] sm:$0xff]
      %v1635 = vld [vmem:[%s5 + $0x350] sm:$0xff]
      %v1636 = vld [vmem:[%s5 + $0x358] sm:$0xff]
      %v1637 = vld [vmem:[%s5 + $0x360] sm:$0xff]
      %v1638 = vld [vmem:[%s5 + $0x368] sm:$0xff]
      %v1639 = vld [vmem:[%s5 + $0x370] sm:$0xff]
      %v1640 = vld [vmem:[%s5 + $0x378] sm:$0xff]
      %v1641 = vld [vmem:[%s5 + $0x380] sm:$0xff]
      %v1642 = vld [vmem:[%s5 + $0x388] sm:$0xff]
      %v1643 = vld [vmem:[%s5 + $0x390] sm:$0xff]
      %v1644 = vld [vmem:[%s5 + $0x398] sm:$0xff]
      %v1645 = vld [vmem:[%s5 + $0x3a0] sm:$0xff]
      %v1646 = vld [vmem:[%s5 + $0x3a8] sm:$0xff]
      %v1647 = vld [vmem:[%s5 + $0x3b0] sm:$0xff]
      %v1648 = vld [vmem:[%s5 + $0x3b8] sm:$0xff]
      %v1649 = vld [vmem:[%s5 + $0x3c0] sm:$0xff]
      %v1650 = vld [vmem:[%s5 + $0x3c8] sm:$0xff]
      %v1651 = vld [vmem:[%s5 + $0x3d0] sm:$0xff]
      %v1652 = vld [vmem:[%s5 + $0x3d8] sm:$0xff]
      %v1653 = vld [vmem:[%s5 + $0x3e0] sm:$0xff]
      %v1654 = vld [vmem:[%s5 + $0x3e8] sm:$0xff]
      %v1655 = vld [vmem:[%s5 + $0x3f0] sm:$0xff]
      %v1656 = vld [vmem:[%s5 + $0x3f8] sm:$0xff]
      %v1657 = vld [vmem:[%s6] sm:$0xf]
      %v1659 = vperm.slane %v1657, 0
      %v1660 = vperm.slane %v1657, 1
      %v1661 = vperm.slane %v1657, 2
      %v1662 = vperm.slane %v1657, 3
      %v1795 = vunpack.c.l.b16 %v1529
      %v1796 = vunpack.c.h.b16 %v1529
      %v1797 = vunpack.c.l.b16 %v1530
      %v1798 = vunpack.c.h.b16 %v1530
      %v1799 = vunpack.c.l.b16 %v1531
      %v1800 = vunpack.c.h.b16 %v1531
      %v1801 = vunpack.c.l.b16 %v1532
      %v1802 = vunpack.c.h.b16 %v1532
      %v1803 = vunpack.c.l.b16 %v1533
      %v1804 = vunpack.c.h.b16 %v1533
      %v1805 = vunpack.c.l.b16 %v1534
      %v1806 = vunpack.c.h.b16 %v1534
      %v1807 = vunpack.c.l.b16 %v1535
      %v1808 = vunpack.c.h.b16 %v1535
      %v1809 = vunpack.c.l.b16 %v1536
      %v1810 = vunpack.c.h.b16 %v1536
      %v1811 = vunpack.c.l.b16 %v1537
      %v1812 = vunpack.c.h.b16 %v1537
      %v1813 = vunpack.c.l.b16 %v1538
      %v1814 = vunpack.c.h.b16 %v1538
      %v1815 = vunpack.c.l.b16 %v1539
      %v1816 = vunpack.c.h.b16 %v1539
      %v1817 = vunpack.c.l.b16 %v1540
      %v1818 = vunpack.c.h.b16 %v1540
      %v1819 = vunpack.c.l.b16 %v1541
      %v1820 = vunpack.c.h.b16 %v1541
      %v1821 = vunpack.c.l.b16 %v1542
      %v1822 = vunpack.c.h.b16 %v1542
      %v1823 = vunpack.c.l.b16 %v1543
      %v1824 = vunpack.c.h.b16 %v1543
      %v1825 = vunpack.c.l.b16 %v1544
      %v1826 = vunpack.c.h.b16 %v1544
      %v1827 = vunpack.c.l.b16 %v1545
      %v1828 = vunpack.c.h.b16 %v1545
      %v1829 = vunpack.c.l.b16 %v1546
      %v1830 = vunpack.c.h.b16 %v1546
      %v1831 = vunpack.c.l.b16 %v1547
      %v1832 = vunpack.c.h.b16 %v1547
      %v1833 = vunpack.c.l.b16 %v1548
      %v1834 = vunpack.c.h.b16 %v1548
      %v1835 = vunpack.c.l.b16 %v1549
      %v1836 = vunpack.c.h.b16 %v1549
      %v1837 = vunpack.c.l.b16 %v1550
      %v1838 = vunpack.c.h.b16 %v1550
      %v1839 = vunpack.c.l.b16 %v1551
      %v1840 = vunpack.c.h.b16 %v1551
      %v1841 = vunpack.c.l.b16 %v1552
      %v1842 = vunpack.c.h.b16 %v1552
      %v1843 = vunpack.c.l.b16 %v1553
      %v1844 = vunpack.c.h.b16 %v1553
      %v1845 = vunpack.c.l.b16 %v1554
      %v1846 = vunpack.c.h.b16 %v1554
      %v1847 = vunpack.c.l.b16 %v1555
      %v1848 = vunpack.c.h.b16 %v1555
      %v1849 = vunpack.c.l.b16 %v1556
      %v1850 = vunpack.c.h.b16 %v1556
      %v1851 = vunpack.c.l.b16 %v1557
      %v1852 = vunpack.c.h.b16 %v1557
      %v1853 = vunpack.c.l.b16 %v1558
      %v1854 = vunpack.c.h.b16 %v1558
      %v1855 = vunpack.c.l.b16 %v1559
      %v1856 = vunpack.c.h.b16 %v1559
      %v1857 = vunpack.c.l.b16 %v1560
      %v1858 = vunpack.c.h.b16 %v1560
      %v1859 = vunpack.c.l.b16 %v1561
      %v1860 = vunpack.c.h.b16 %v1561
      %v1861 = vunpack.c.l.b16 %v1562
      %v1862 = vunpack.c.h.b16 %v1562
      %v1863 = vunpack.c.l.b16 %v1563
      %v1864 = vunpack.c.h.b16 %v1563
      %v1865 = vunpack.c.l.b16 %v1564
      %v1866 = vunpack.c.h.b16 %v1564
      %v1867 = vunpack.c.l.b16 %v1565
      %v1868 = vunpack.c.h.b16 %v1565
      %v1869 = vunpack.c.l.b16 %v1566
      %v1870 = vunpack.c.h.b16 %v1566
      %v1871 = vunpack.c.l.b16 %v1567
      %v1872 = vunpack.c.h.b16 %v1567
      %v1873 = vunpack.c.l.b16 %v1568
      %v1874 = vunpack.c.h.b16 %v1568
      %v1875 = vunpack.c.l.b16 %v1569
      %v1876 = vunpack.c.h.b16 %v1569
      %v1877 = vunpack.c.l.b16 %v1570
      %v1878 = vunpack.c.h.b16 %v1570
      %v1879 = vunpack.c.l.b16 %v1571
      %v1880 = vunpack.c.h.b16 %v1571
      %v1881 = vunpack.c.l.b16 %v1572
      %v1882 = vunpack.c.h.b16 %v1572
      %v1883 = vunpack.c.l.b16 %v1573
      %v1884 = vunpack.c.h.b16 %v1573
      %v1885 = vunpack.c.l.b16 %v1574
      %v1886 = vunpack.c.h.b16 %v1574
      %v1887 = vunpack.c.l.b16 %v1575
      %v1888 = vunpack.c.h.b16 %v1575
      %v1889 = vunpack.c.l.b16 %v1576
      %v1890 = vunpack.c.h.b16 %v1576
      %v1891 = vunpack.c.l.b16 %v1577
      %v1892 = vunpack.c.h.b16 %v1577
      %v1893 = vunpack.c.l.b16 %v1578
      %v1894 = vunpack.c.h.b16 %v1578
      %v1895 = vunpack.c.l.b16 %v1579
      %v1896 = vunpack.c.h.b16 %v1579
      %v1897 = vunpack.c.l.b16 %v1580
      %v1898 = vunpack.c.h.b16 %v1580
      %v1899 = vunpack.c.l.b16 %v1581
      %v1900 = vunpack.c.h.b16 %v1581
      %v1901 = vunpack.c.l.b16 %v1582
      %v1902 = vunpack.c.h.b16 %v1582
      %v1903 = vunpack.c.l.b16 %v1583
      %v1904 = vunpack.c.h.b16 %v1583
      %v1905 = vunpack.c.l.b16 %v1584
      %v1906 = vunpack.c.h.b16 %v1584
      %v1907 = vunpack.c.l.b16 %v1585
      %v1908 = vunpack.c.h.b16 %v1585
      %v1909 = vunpack.c.l.b16 %v1586
      %v1910 = vunpack.c.h.b16 %v1586
      %v1911 = vunpack.c.l.b16 %v1587
      %v1912 = vunpack.c.h.b16 %v1587
      %v1913 = vunpack.c.l.b16 %v1588
      %v1914 = vunpack.c.h.b16 %v1588
      %v1915 = vunpack.c.l.b16 %v1589
      %v1916 = vunpack.c.h.b16 %v1589
      %v1917 = vunpack.c.l.b16 %v1590
      %v1918 = vunpack.c.h.b16 %v1590
      %v1919 = vunpack.c.l.b16 %v1591
      %v1920 = vunpack.c.h.b16 %v1591
      %v1921 = vunpack.c.l.b16 %v1592
      %v1922 = vunpack.c.h.b16 %v1592
      %v1923 = vunpack.c.l.b16 %v1593
      %v1924 = vunpack.c.h.b16 %v1593
      %v1925 = vunpack.c.l.b16 %v1594
      %v1926 = vunpack.c.h.b16 %v1594
      %v1927 = vunpack.c.l.b16 %v1595
      %v1928 = vunpack.c.h.b16 %v1595
      %v1929 = vunpack.c.l.b16 %v1596
      %v1930 = vunpack.c.h.b16 %v1596
      %v1931 = vunpack.c.l.b16 %v1597
      %v1932 = vunpack.c.h.b16 %v1597
      %v1933 = vunpack.c.l.b16 %v1598
      %v1934 = vunpack.c.h.b16 %v1598
      %v1935 = vunpack.c.l.b16 %v1599
      %v1936 = vunpack.c.h.b16 %v1599
      %v1937 = vunpack.c.l.b16 %v1600
      %v1938 = vunpack.c.h.b16 %v1600
      %v1939 = vunpack.c.l.b16 %v1601
      %v1940 = vunpack.c.h.b16 %v1601
      %v1941 = vunpack.c.l.b16 %v1602
      %v1942 = vunpack.c.h.b16 %v1602
      %v1943 = vunpack.c.l.b16 %v1603
      %v1944 = vunpack.c.h.b16 %v1603
      %v1945 = vunpack.c.l.b16 %v1604
      %v1946 = vunpack.c.h.b16 %v1604
      %v1947 = vunpack.c.l.b16 %v1605
      %v1948 = vunpack.c.h.b16 %v1605
      %v1949 = vunpack.c.l.b16 %v1606
      %v1950 = vunpack.c.h.b16 %v1606
      %v1951 = vunpack.c.l.b16 %v1607
      %v1952 = vunpack.c.h.b16 %v1607
      %v1953 = vunpack.c.l.b16 %v1608
      %v1954 = vunpack.c.h.b16 %v1608
      %v1955 = vunpack.c.l.b16 %v1609
      %v1956 = vunpack.c.h.b16 %v1609
      %v1957 = vunpack.c.l.b16 %v1610
      %v1958 = vunpack.c.h.b16 %v1610
      %v1959 = vunpack.c.l.b16 %v1611
      %v1960 = vunpack.c.h.b16 %v1611
      %v1961 = vunpack.c.l.b16 %v1612
      %v1962 = vunpack.c.h.b16 %v1612
      %v1963 = vunpack.c.l.b16 %v1613
      %v1964 = vunpack.c.h.b16 %v1613
      %v1965 = vunpack.c.l.b16 %v1614
      %v1966 = vunpack.c.h.b16 %v1614
      %v1967 = vunpack.c.l.b16 %v1615
      %v1968 = vunpack.c.h.b16 %v1615
      %v1969 = vunpack.c.l.b16 %v1616
      %v1970 = vunpack.c.h.b16 %v1616
      %v1971 = vunpack.c.l.b16 %v1617
      %v1972 = vunpack.c.h.b16 %v1617
      %v1973 = vunpack.c.l.b16 %v1618
      %v1974 = vunpack.c.h.b16 %v1618
      %v1975 = vunpack.c.l.b16 %v1619
      %v1976 = vunpack.c.h.b16 %v1619
      %v1977 = vunpack.c.l.b16 %v1620
      %v1978 = vunpack.c.h.b16 %v1620
      %v1979 = vunpack.c.l.b16 %v1621
      %v1980 = vunpack.c.h.b16 %v1621
      %v1981 = vunpack.c.l.b16 %v1622
      %v1982 = vunpack.c.h.b16 %v1622
      %v1983 = vunpack.c.l.b16 %v1623
      %v1984 = vunpack.c.h.b16 %v1623
      %v1985 = vunpack.c.l.b16 %v1624
      %v1986 = vunpack.c.h.b16 %v1624
      %v1987 = vunpack.c.l.b16 %v1625
      %v1988 = vunpack.c.h.b16 %v1625
      %v1989 = vunpack.c.l.b16 %v1626
      %v1990 = vunpack.c.h.b16 %v1626
      %v1991 = vunpack.c.l.b16 %v1627
      %v1992 = vunpack.c.h.b16 %v1627
      %v1993 = vunpack.c.l.b16 %v1628
      %v1994 = vunpack.c.h.b16 %v1628
      %v1995 = vunpack.c.l.b16 %v1629
      %v1996 = vunpack.c.h.b16 %v1629
      %v1997 = vunpack.c.l.b16 %v1630
      %v1998 = vunpack.c.h.b16 %v1630
      %v1999 = vunpack.c.l.b16 %v1631
      %v2000 = vunpack.c.h.b16 %v1631
      %v2001 = vunpack.c.l.b16 %v1632
      %v2002 = vunpack.c.h.b16 %v1632
      %v2003 = vunpack.c.l.b16 %v1633
      %v2004 = vunpack.c.h.b16 %v1633
      %v2005 = vunpack.c.l.b16 %v1634
      %v2006 = vunpack.c.h.b16 %v1634
      %v2007 = vunpack.c.l.b16 %v1635
      %v2008 = vunpack.c.h.b16 %v1635
      %v2009 = vunpack.c.l.b16 %v1636
      %v2010 = vunpack.c.h.b16 %v1636
      %v2011 = vunpack.c.l.b16 %v1637
      %v2012 = vunpack.c.h.b16 %v1637
      %v2013 = vunpack.c.l.b16 %v1638
      %v2014 = vunpack.c.h.b16 %v1638
      %v2015 = vunpack.c.l.b16 %v1639
      %v2016 = vunpack.c.h.b16 %v1639
      %v2017 = vunpack.c.l.b16 %v1640
      %v2018 = vunpack.c.h.b16 %v1640
      %v2019 = vunpack.c.l.b16 %v1641
      %v2020 = vunpack.c.h.b16 %v1641
      %v2021 = vunpack.c.l.b16 %v1642
      %v2022 = vunpack.c.h.b16 %v1642
      %v2023 = vunpack.c.l.b16 %v1643
      %v2024 = vunpack.c.h.b16 %v1643
      %v2025 = vunpack.c.l.b16 %v1644
      %v2026 = vunpack.c.h.b16 %v1644
      %v2027 = vunpack.c.l.b16 %v1645
      %v2028 = vunpack.c.h.b16 %v1645
      %v2029 = vunpack.c.l.b16 %v1646
      %v2030 = vunpack.c.h.b16 %v1646
      %v2031 = vunpack.c.l.b16 %v1647
      %v2032 = vunpack.c.h.b16 %v1647
      %v2033 = vunpack.c.l.b16 %v1648
      %v2034 = vunpack.c.h.b16 %v1648
      %v2035 = vunpack.c.l.b16 %v1649
      %v2036 = vunpack.c.h.b16 %v1649
      %v2037 = vunpack.c.l.b16 %v1650
      %v2038 = vunpack.c.h.b16 %v1650
      %v2039 = vunpack.c.l.b16 %v1651
      %v2040 = vunpack.c.h.b16 %v1651
      %v2041 = vunpack.c.l.b16 %v1652
      %v2042 = vunpack.c.h.b16 %v1652
      %v2043 = vunpack.c.l.b16 %v1653
      %v2044 = vunpack.c.h.b16 %v1653
      %v2045 = vunpack.c.l.b16 %v1654
      %v2046 = vunpack.c.h.b16 %v1654
      %v2047 = vunpack.c.l.b16 %v1655
      %v2048 = vunpack.c.h.b16 %v1655
      %v2049 = vunpack.c.l.b16 %v1656
      %v2050 = vunpack.c.h.b16 %v1656
      %v2051 = vpack.c.b16 %v1799, %v1795
      %v2052 = vpack.c.b16 %v1800, %v1796
      %v2053 = vpack.c.b16 %v1801, %v1797
      %v2054 = vpack.c.b16 %v1802, %v1798
      %v2055 = vpack.c.b16 %v1807, %v1803
      %v2056 = vpack.c.b16 %v1808, %v1804
      %v2057 = vpack.c.b16 %v1809, %v1805
      %v2058 = vpack.c.b16 %v1810, %v1806
      %v2059 = vpack.c.b16 %v1815, %v1811
      %v2060 = vpack.c.b16 %v1816, %v1812
      %v2061 = vpack.c.b16 %v1817, %v1813
      %v2062 = vpack.c.b16 %v1818, %v1814
      %v2063 = vpack.c.b16 %v1823, %v1819
      %v2064 = vpack.c.b16 %v1824, %v1820
      %v2065 = vpack.c.b16 %v1825, %v1821
      %v2066 = vpack.c.b16 %v1826, %v1822
      %v2067 = vpack.c.b16 %v1831, %v1827
      %v2068 = vpack.c.b16 %v1832, %v1828
      %v2069 = vpack.c.b16 %v1833, %v1829
      %v2070 = vpack.c.b16 %v1834, %v1830
      %v2071 = vpack.c.b16 %v1839, %v1835
      %v2072 = vpack.c.b16 %v1840, %v1836
      %v2073 = vpack.c.b16 %v1841, %v1837
      %v2074 = vpack.c.b16 %v1842, %v1838
      %v2075 = vpack.c.b16 %v1847, %v1843
      %v2076 = vpack.c.b16 %v1848, %v1844
      %v2077 = vpack.c.b16 %v1849, %v1845
      %v2078 = vpack.c.b16 %v1850, %v1846
      %v2079 = vpack.c.b16 %v1855, %v1851
      %v2080 = vpack.c.b16 %v1856, %v1852
      %v2081 = vpack.c.b16 %v1857, %v1853
      %v2082 = vpack.c.b16 %v1858, %v1854
      %v2083 = vpack.c.b16 %v1863, %v1859
      %v2084 = vpack.c.b16 %v1864, %v1860
      %v2085 = vpack.c.b16 %v1865, %v1861
      %v2086 = vpack.c.b16 %v1866, %v1862
      %v2087 = vpack.c.b16 %v1871, %v1867
      %v2088 = vpack.c.b16 %v1872, %v1868
      %v2089 = vpack.c.b16 %v1873, %v1869
      %v2090 = vpack.c.b16 %v1874, %v1870
      %v2091 = vpack.c.b16 %v1879, %v1875
      %v2092 = vpack.c.b16 %v1880, %v1876
      %v2093 = vpack.c.b16 %v1881, %v1877
      %v2094 = vpack.c.b16 %v1882, %v1878
      %v2095 = vpack.c.b16 %v1887, %v1883
      %v2096 = vpack.c.b16 %v1888, %v1884
      %v2097 = vpack.c.b16 %v1889, %v1885
      %v2098 = vpack.c.b16 %v1890, %v1886
      %v2099 = vpack.c.b16 %v1895, %v1891
      %v2100 = vpack.c.b16 %v1896, %v1892
      %v2101 = vpack.c.b16 %v1897, %v1893
      %v2102 = vpack.c.b16 %v1898, %v1894
      %v2103 = vpack.c.b16 %v1903, %v1899
      %v2104 = vpack.c.b16 %v1904, %v1900
      %v2105 = vpack.c.b16 %v1905, %v1901
      %v2106 = vpack.c.b16 %v1906, %v1902
      %v2107 = vpack.c.b16 %v1911, %v1907
      %v2108 = vpack.c.b16 %v1912, %v1908
      %v2109 = vpack.c.b16 %v1913, %v1909
      %v2110 = vpack.c.b16 %v1914, %v1910
      %v2111 = vpack.c.b16 %v1919, %v1915
      %v2112 = vpack.c.b16 %v1920, %v1916
      %v2113 = vpack.c.b16 %v1921, %v1917
      %v2114 = vpack.c.b16 %v1922, %v1918
      %v2115 = vpack.c.b16 %v1927, %v1923
      %v2116 = vpack.c.b16 %v1928, %v1924
      %v2117 = vpack.c.b16 %v1929, %v1925
      %v2118 = vpack.c.b16 %v1930, %v1926
      %v2119 = vpack.c.b16 %v1935, %v1931
      %v2120 = vpack.c.b16 %v1936, %v1932
      %v2121 = vpack.c.b16 %v1937, %v1933
      %v2122 = vpack.c.b16 %v1938, %v1934
      %v2123 = vpack.c.b16 %v1943, %v1939
      %v2124 = vpack.c.b16 %v1944, %v1940
      %v2125 = vpack.c.b16 %v1945, %v1941
      %v2126 = vpack.c.b16 %v1946, %v1942
      %v2127 = vpack.c.b16 %v1951, %v1947
      %v2128 = vpack.c.b16 %v1952, %v1948
      %v2129 = vpack.c.b16 %v1953, %v1949
      %v2130 = vpack.c.b16 %v1954, %v1950
      %v2131 = vpack.c.b16 %v1959, %v1955
      %v2132 = vpack.c.b16 %v1960, %v1956
      %v2133 = vpack.c.b16 %v1961, %v1957
      %v2134 = vpack.c.b16 %v1962, %v1958
      %v2135 = vpack.c.b16 %v1967, %v1963
      %v2136 = vpack.c.b16 %v1968, %v1964
      %v2137 = vpack.c.b16 %v1969, %v1965
      %v2138 = vpack.c.b16 %v1970, %v1966
      %v2139 = vpack.c.b16 %v1975, %v1971
      %v2140 = vpack.c.b16 %v1976, %v1972
      %v2141 = vpack.c.b16 %v1977, %v1973
      %v2142 = vpack.c.b16 %v1978, %v1974
      %v2143 = vpack.c.b16 %v1983, %v1979
      %v2144 = vpack.c.b16 %v1984, %v1980
      %v2145 = vpack.c.b16 %v1985, %v1981
      %v2146 = vpack.c.b16 %v1986, %v1982
      %v2147 = vpack.c.b16 %v1991, %v1987
      %v2148 = vpack.c.b16 %v1992, %v1988
      %v2149 = vpack.c.b16 %v1993, %v1989
      %v2150 = vpack.c.b16 %v1994, %v1990
      %v2151 = vpack.c.b16 %v1999, %v1995
      %v2152 = vpack.c.b16 %v2000, %v1996
      %v2153 = vpack.c.b16 %v2001, %v1997
      %v2154 = vpack.c.b16 %v2002, %v1998
      %v2155 = vpack.c.b16 %v2007, %v2003
      %v2156 = vpack.c.b16 %v2008, %v2004
      %v2157 = vpack.c.b16 %v2009, %v2005
      %v2158 = vpack.c.b16 %v2010, %v2006
      %v2159 = vpack.c.b16 %v2015, %v2011
      %v2160 = vpack.c.b16 %v2016, %v2012
      %v2161 = vpack.c.b16 %v2017, %v2013
      %v2162 = vpack.c.b16 %v2018, %v2014
      %v2163 = vpack.c.b16 %v2023, %v2019
      %v2164 = vpack.c.b16 %v2024, %v2020
      %v2165 = vpack.c.b16 %v2025, %v2021
      %v2166 = vpack.c.b16 %v2026, %v2022
      %v2167 = vpack.c.b16 %v2031, %v2027
      %v2168 = vpack.c.b16 %v2032, %v2028
      %v2169 = vpack.c.b16 %v2033, %v2029
      %v2170 = vpack.c.b16 %v2034, %v2030
      %v2171 = vpack.c.b16 %v2039, %v2035
      %v2172 = vpack.c.b16 %v2040, %v2036
      %v2173 = vpack.c.b16 %v2041, %v2037
      %v2174 = vpack.c.b16 %v2042, %v2038
      %v2175 = vpack.c.b16 %v2047, %v2043
      %v2176 = vpack.c.b16 %v2048, %v2044
      %v2177 = vpack.c.b16 %v2049, %v2045
      %v2178 = vpack.c.b16 %v2050, %v2046
      %2307 = vmatpush.bf16.msra.mxu0 %v2079
      %2308 = vmatpush.bf16.msra.mxu0 %v2075
      %2309 = vmatpush.bf16.msra.mxu0 %v2071
      %2310 = vmatpush.bf16.msra.mxu0 %v2067
      %2311 = vmatpush.bf16.msra.mxu0 %v2063
      %2312 = vmatpush.bf16.msra.mxu0 %v2059
      %2313 = vmatpush.bf16.msra.mxu0 %v2055
      %2314 = vmatpush.bf16.msra.mxu0 %v2051
      %2315 = vmatmul.bf16.gmra.mxu0 %v1521
      %v2316 = vpop.f32.mrf.mxu0
      %v2317 = vadd.f32 %v1659, %v2316
      %v2318 = vpop.f32.mrf.mxu0
      %v2319 = vadd.f32 %v1659, %v2318
      %2320 = vmatmul.bf16.gmra.mxu0 %v1525
      %v2321 = vpop.f32.mrf.mxu0
      %v2322 = vadd.f32 %v1659, %v2321
      %v2323 = vpop.f32.mrf.mxu0
      %v2324 = vadd.f32 %v1659, %v2323
      %2325 = vdwg.mxu0
      %2326 = vmatpush.bf16.msra.mxu0 %v2111
      %2327 = vmatpush.bf16.msra.mxu0 %v2107
      %2328 = vmatpush.bf16.msra.mxu0 %v2103
      %2329 = vmatpush.bf16.msra.mxu0 %v2099
      %2330 = vmatpush.bf16.msra.mxu0 %v2095
      %2331 = vmatpush.bf16.msra.mxu0 %v2091
      %2332 = vmatpush.bf16.msra.mxu0 %v2087
      %2333 = vmatpush.bf16.msra.mxu0 %v2083
      %2334 = vmatmul.bf16.gmra.mxu0 %v1522
      %v2335 = vpop.f32.mrf.mxu0
      %v2336 = vadd.f32 %v2317, %v2335
      %v2337 = vpop.f32.mrf.mxu0
      %v2338 = vadd.f32 %v2319, %v2337
      %2339 = vmatmul.bf16.gmra.mxu0 %v1526
      %v2340 = vpop.f32.mrf.mxu0
      %v2341 = vadd.f32 %v2322, %v2340
      %v2342 = vpop.f32.mrf.mxu0
      %v2343 = vadd.f32 %v2324, %v2342
      %2344 = vdwg.mxu0
      %2345 = vmatpush.bf16.msra.mxu0 %v2143
      %2346 = vmatpush.bf16.msra.mxu0 %v2139
      %2347 = vmatpush.bf16.msra.mxu0 %v2135
      %2348 = vmatpush.bf16.msra.mxu0 %v2131
      %2349 = vmatpush.bf16.msra.mxu0 %v2127
      %2350 = vmatpush.bf16.msra.mxu0 %v2123
      %2351 = vmatpush.bf16.msra.mxu0 %v2119
      %2352 = vmatpush.bf16.msra.mxu0 %v2115
      %2353 = vmatmul.bf16.gmra.mxu0 %v1523
      %v2354 = vpop.f32.mrf.mxu0
      %v2355 = vadd.f32 %v2336, %v2354
      %v2356 = vpop.f32.mrf.mxu0
      %v2357 = vadd.f32 %v2338, %v2356
      %2358 = vmatmul.bf16.gmra.mxu0 %v1527
      %v2359 = vpop.f32.mrf.mxu0
      %v2360 = vadd.f32 %v2341, %v2359
      %v2361 = vpop.f32.mrf.mxu0
      %v2362 = vadd.f32 %v2343, %v2361
      %2363 = vdwg.mxu0
      %2364 = vmatpush.bf16.msra.mxu0 %v2175
      %2365 = vmatpush.bf16.msra.mxu0 %v2171
      %2366 = vmatpush.bf16.msra.mxu0 %v2167
      %2367 = vmatpush.bf16.msra.mxu0 %v2163
      %2368 = vmatpush.bf16.msra.mxu0 %v2159
      %2369 = vmatpush.bf16.msra.mxu0 %v2155
      %2370 = vmatpush.bf16.msra.mxu0 %v2151
      %2371 = vmatpush.bf16.msra.mxu0 %v2147
      %2372 = vmatmul.bf16.gmra.mxu0 %v1524
      %v2373 = vpop.f32.mrf.mxu0
      %v2374 = vadd.f32 %v2355, %v2373
      %v2375 = vpop.f32.mrf.mxu0
      %v2376 = vadd.f32 %v2357, %v2375
      %2377 = vmatmul.bf16.gmra.mxu0 %v1528
      %v2378 = vpop.f32.mrf.mxu0
      %v2379 = vadd.f32 %v2360, %v2378
      %v2380 = vpop.f32.mrf.mxu0
      %v2381 = vadd.f32 %v2362, %v2380
      %2382 = vdwg.mxu0
      %2383 = vmatpush.bf16.msra.mxu0 %v2080
      %2384 = vmatpush.bf16.msra.mxu0 %v2076
      %2385 = vmatpush.bf16.msra.mxu0 %v2072
      %2386 = vmatpush.bf16.msra.mxu0 %v2068
      %2387 = vmatpush.bf16.msra.mxu0 %v2064
      %2388 = vmatpush.bf16.msra.mxu0 %v2060
      %2389 = vmatpush.bf16.msra.mxu0 %v2056
      %2390 = vmatpush.bf16.msra.mxu0 %v2052
      %2391 = vmatmul.bf16.gmra.mxu0 %v1521
      %v2392 = vpop.f32.mrf.mxu0
      %v2393 = vadd.f32 %v1660, %v2392
      %v2394 = vpop.f32.mrf.mxu0
      %v2395 = vadd.f32 %v1660, %v2394
      %2396 = vmatmul.bf16.gmra.mxu0 %v1525
      %v2397 = vpop.f32.mrf.mxu0
      %v2398 = vadd.f32 %v1660, %v2397
      %v2399 = vpop.f32.mrf.mxu0
      %v2400 = vadd.f32 %v1660, %v2399
      %2401 = vdwg.mxu0
      %2402 = vmatpush.bf16.msra.mxu0 %v2112
      %2403 = vmatpush.bf16.msra.mxu0 %v2108
      %2404 = vmatpush.bf16.msra.mxu0 %v2104
      %2405 = vmatpush.bf16.msra.mxu0 %v2100
      %2406 = vmatpush.bf16.msra.mxu0 %v2096
      %2407 = vmatpush.bf16.msra.mxu0 %v2092
      %2408 = vmatpush.bf16.msra.mxu0 %v2088
      %2409 = vmatpush.bf16.msra.mxu0 %v2084
      %2410 = vmatmul.bf16.gmra.mxu0 %v1522
      %v2411 = vpop.f32.mrf.mxu0
      %v2412 = vadd.f32 %v2393, %v2411
      %v2413 = vpop.f32.mrf.mxu0
      %v2414 = vadd.f32 %v2395, %v2413
      %2415 = vmatmul.bf16.gmra.mxu0 %v1526
      %v2416 = vpop.f32.mrf.mxu0
      %v2417 = vadd.f32 %v2398, %v2416
      %v2418 = vpop.f32.mrf.mxu0
      %v2419 = vadd.f32 %v2400, %v2418
      %2420 = vdwg.mxu0
      %2421 = vmatpush.bf16.msra.mxu0 %v2144
      %2422 = vmatpush.bf16.msra.mxu0 %v2140
      %2423 = vmatpush.bf16.msra.mxu0 %v2136
      %2424 = vmatpush.bf16.msra.mxu0 %v2132
      %2425 = vmatpush.bf16.msra.mxu0 %v2128
      %2426 = vmatpush.bf16.msra.mxu0 %v2124
      %2427 = vmatpush.bf16.msra.mxu0 %v2120
      %2428 = vmatpush.bf16.msra.mxu0 %v2116
      %2429 = vmatmul.bf16.gmra.mxu0 %v1523
      %v2430 = vpop.f32.mrf.mxu0
      %v2431 = vadd.f32 %v2412, %v2430
      %v2432 = vpop.f32.mrf.mxu0
      %v2433 = vadd.f32 %v2414, %v2432
      %2434 = vmatmul.bf16.gmra.mxu0 %v1527
      %v2435 = vpop.f32.mrf.mxu0
      %v2436 = vadd.f32 %v2417, %v2435
      %v2437 = vpop.f32.mrf.mxu0
      %v2438 = vadd.f32 %v2419, %v2437
      %2439 = vdwg.mxu0
      %2440 = vmatpush.bf16.msra.mxu0 %v2176
      %2441 = vmatpush.bf16.msra.mxu0 %v2172
      %2442 = vmatpush.bf16.msra.mxu0 %v2168
      %2443 = vmatpush.bf16.msra.mxu0 %v2164
      %2444 = vmatpush.bf16.msra.mxu0 %v2160
      %2445 = vmatpush.bf16.msra.mxu0 %v2156
      %2446 = vmatpush.bf16.msra.mxu0 %v2152
      %2447 = vmatpush.bf16.msra.mxu0 %v2148
      %2448 = vmatmul.bf16.gmra.mxu0 %v1524
      %v2449 = vpop.f32.mrf.mxu0
      %v2450 = vadd.f32 %v2431, %v2449
      %v2451 = vpop.f32.mrf.mxu0
      %v2452 = vadd.f32 %v2433, %v2451
      %2453 = vmatmul.bf16.gmra.mxu0 %v1528
      %v2454 = vpop.f32.mrf.mxu0
      %v2455 = vadd.f32 %v2436, %v2454
      %v2456 = vpop.f32.mrf.mxu0
      %v2457 = vadd.f32 %v2438, %v2456
      %2458 = vdwg.mxu0
      %2459 = vmatpush.bf16.msra.mxu0 %v2081
      %2460 = vmatpush.bf16.msra.mxu0 %v2077
      %2461 = vmatpush.bf16.msra.mxu0 %v2073
      %2462 = vmatpush.bf16.msra.mxu0 %v2069
      %2463 = vmatpush.bf16.msra.mxu0 %v2065
      %2464 = vmatpush.bf16.msra.mxu0 %v2061
      %2465 = vmatpush.bf16.msra.mxu0 %v2057
      %2466 = vmatpush.bf16.msra.mxu0 %v2053
      %2467 = vmatmul.bf16.gmra.mxu0 %v1521
      %v2468 = vpop.f32.mrf.mxu0
      %v2469 = vadd.f32 %v1661, %v2468
      %v2470 = vpop.f32.mrf.mxu0
      %v2471 = vadd.f32 %v1661, %v2470
      %2472 = vmatmul.bf16.gmra.mxu0 %v1525
      %v2473 = vpop.f32.mrf.mxu0
      %v2474 = vadd.f32 %v1661, %v2473
      %v2475 = vpop.f32.mrf.mxu0
      %v2476 = vadd.f32 %v1661, %v2475
      %2477 = vdwg.mxu0
      %2478 = vmatpush.bf16.msra.mxu0 %v2113
      %2479 = vmatpush.bf16.msra.mxu0 %v2109
      %2480 = vmatpush.bf16.msra.mxu0 %v2105
      %2481 = vmatpush.bf16.msra.mxu0 %v2101
      %2482 = vmatpush.bf16.msra.mxu0 %v2097
      %2483 = vmatpush.bf16.msra.mxu0 %v2093
      %2484 = vmatpush.bf16.msra.mxu0 %v2089
      %2485 = vmatpush.bf16.msra.mxu0 %v2085
      %2486 = vmatmul.bf16.gmra.mxu0 %v1522
      %v2487 = vpop.f32.mrf.mxu0
      %v2488 = vadd.f32 %v2469, %v2487
      %v2489 = vpop.f32.mrf.mxu0
      %v2490 = vadd.f32 %v2471, %v2489
      %2491 = vmatmul.bf16.gmra.mxu0 %v1526
      %v2492 = vpop.f32.mrf.mxu0
      %v2493 = vadd.f32 %v2474, %v2492
      %v2494 = vpop.f32.mrf.mxu0
      %v2495 = vadd.f32 %v2476, %v2494
      %2496 = vdwg.mxu0
      %2497 = vmatpush.bf16.msra.mxu0 %v2145
      %2498 = vmatpush.bf16.msra.mxu0 %v2141
      %2499 = vmatpush.bf16.msra.mxu0 %v2137
      %2500 = vmatpush.bf16.msra.mxu0 %v2133
      %2501 = vmatpush.bf16.msra.mxu0 %v2129
      %2502 = vmatpush.bf16.msra.mxu0 %v2125
      %2503 = vmatpush.bf16.msra.mxu0 %v2121
      %2504 = vmatpush.bf16.msra.mxu0 %v2117
      %2505 = vmatmul.bf16.gmra.mxu0 %v1523
      %v2506 = vpop.f32.mrf.mxu0
      %v2507 = vadd.f32 %v2488, %v2506
      %v2508 = vpop.f32.mrf.mxu0
      %v2509 = vadd.f32 %v2490, %v2508
      %2510 = vmatmul.bf16.gmra.mxu0 %v1527
      %v2511 = vpop.f32.mrf.mxu0
      %v2512 = vadd.f32 %v2493, %v2511
      %v2513 = vpop.f32.mrf.mxu0
      %v2514 = vadd.f32 %v2495, %v2513
      %2515 = vdwg.mxu0
      %2516 = vmatpush.bf16.msra.mxu0 %v2177
      %2517 = vmatpush.bf16.msra.mxu0 %v2173
      %2518 = vmatpush.bf16.msra.mxu0 %v2169
      %2519 = vmatpush.bf16.msra.mxu0 %v2165
      %2520 = vmatpush.bf16.msra.mxu0 %v2161
      %2521 = vmatpush.bf16.msra.mxu0 %v2157
      %2522 = vmatpush.bf16.msra.mxu0 %v2153
      %2523 = vmatpush.bf16.msra.mxu0 %v2149
      %2524 = vmatmul.bf16.gmra.mxu0 %v1524
      %v2525 = vpop.f32.mrf.mxu0
      %v2526 = vadd.f32 %v2507, %v2525
      %v2527 = vpop.f32.mrf.mxu0
      %v2528 = vadd.f32 %v2509, %v2527
      %2529 = vmatmul.bf16.gmra.mxu0 %v1528
      %v2530 = vpop.f32.mrf.mxu0
      %v2531 = vadd.f32 %v2512, %v2530
      %v2532 = vpop.f32.mrf.mxu0
      %v2533 = vadd.f32 %v2514, %v2532
      %2534 = vdwg.mxu0
      %2535 = vmatpush.bf16.msra.mxu0 %v2082
      %2536 = vmatpush.bf16.msra.mxu0 %v2078
      %2537 = vmatpush.bf16.msra.mxu0 %v2074
      %2538 = vmatpush.bf16.msra.mxu0 %v2070
      %2539 = vmatpush.bf16.msra.mxu0 %v2066
      %2540 = vmatpush.bf16.msra.mxu0 %v2062
      %2541 = vmatpush.bf16.msra.mxu0 %v2058
      %2542 = vmatpush.bf16.msra.mxu0 %v2054
      %2543 = vmatmul.bf16.gmra.mxu0 %v1521
      %v2544 = vpop.f32.mrf.mxu0
      %v2545 = vadd.f32 %v1662, %v2544
      %v2546 = vpop.f32.mrf.mxu0
      %v2547 = vadd.f32 %v1662, %v2546
      %2548 = vmatmul.bf16.gmra.mxu0 %v1525
      %v2549 = vpop.f32.mrf.mxu0
      %v2550 = vadd.f32 %v1662, %v2549
      %v2551 = vpop.f32.mrf.mxu0
      %v2552 = vadd.f32 %v1662, %v2551
      %2553 = vdwg.mxu0
      %2554 = vmatpush.bf16.msra.mxu0 %v2114
      %2555 = vmatpush.bf16.msra.mxu0 %v2110
      %2556 = vmatpush.bf16.msra.mxu0 %v2106
      %2557 = vmatpush.bf16.msra.mxu0 %v2102
      %2558 = vmatpush.bf16.msra.mxu0 %v2098
      %2559 = vmatpush.bf16.msra.mxu0 %v2094
      %2560 = vmatpush.bf16.msra.mxu0 %v2090
      %2561 = vmatpush.bf16.msra.mxu0 %v2086
      %2562 = vmatmul.bf16.gmra.mxu0 %v1522
      %v2563 = vpop.f32.mrf.mxu0
      %v2564 = vadd.f32 %v2545, %v2563
      %v2565 = vpop.f32.mrf.mxu0
      %v2566 = vadd.f32 %v2547, %v2565
      %2567 = vmatmul.bf16.gmra.mxu0 %v1526
      %v2568 = vpop.f32.mrf.mxu0
      %v2569 = vadd.f32 %v2550, %v2568
      %v2570 = vpop.f32.mrf.mxu0
      %v2571 = vadd.f32 %v2552, %v2570
      %2572 = vdwg.mxu0
      %2573 = vmatpush.bf16.msra.mxu0 %v2146
      %2574 = vmatpush.bf16.msra.mxu0 %v2142
      %2575 = vmatpush.bf16.msra.mxu0 %v2138
      %2576 = vmatpush.bf16.msra.mxu0 %v2134
      %2577 = vmatpush.bf16.msra.mxu0 %v2130
      %2578 = vmatpush.bf16.msra.mxu0 %v2126
      %2579 = vmatpush.bf16.msra.mxu0 %v2122
      %2580 = vmatpush.bf16.msra.mxu0 %v2118
      %2581 = vmatmul.bf16.gmra.mxu0 %v1523
      %v2582 = vpop.f32.mrf.mxu0
      %v2583 = vadd.f32 %v2564, %v2582
      %v2584 = vpop.f32.mrf.mxu0
      %v2585 = vadd.f32 %v2566, %v2584
      %2586 = vmatmul.bf16.gmra.mxu0 %v1527
      %v2587 = vpop.f32.mrf.mxu0
      %v2588 = vadd.f32 %v2569, %v2587
      %v2589 = vpop.f32.mrf.mxu0
      %v2590 = vadd.f32 %v2571, %v2589
      %2591 = vdwg.mxu0
      %2592 = vmatpush.bf16.msra.mxu0 %v2178
      %2593 = vmatpush.bf16.msra.mxu0 %v2174
      %2594 = vmatpush.bf16.msra.mxu0 %v2170
      %2595 = vmatpush.bf16.msra.mxu0 %v2166
      %2596 = vmatpush.bf16.msra.mxu0 %v2162
      %2597 = vmatpush.bf16.msra.mxu0 %v2158
      %2598 = vmatpush.bf16.msra.mxu0 %v2154
      %2599 = vmatpush.bf16.msra.mxu0 %v2150
      %2600 = vmatmul.bf16.gmra.mxu0 %v1524
      %v2601 = vpop.f32.mrf.mxu0
      %v2602 = vadd.f32 %v2583, %v2601
      %v2603 = vpop.f32.mrf.mxu0
      %v2604 = vadd.f32 %v2585, %v2603
      %2605 = vmatmul.bf16.gmra.mxu0 %v1528
      %v2606 = vpop.f32.mrf.mxu0
      %v2607 = vadd.f32 %v2588, %v2606
      %v2608 = vpop.f32.mrf.mxu0
      %v2609 = vadd.f32 %v2590, %v2608
      %2610 = vdwg.mxu0
      %v2611 = vmax.f32 %v2374, 0.0
      %v2612 = vmax.f32 %v2450, 0.0
      %v2613 = vmax.f32 %v2526, 0.0
      %v2614 = vmax.f32 %v2602, 0.0
      %v2615 = vmax.f32 %v2376, 0.0
      %v2616 = vmax.f32 %v2452, 0.0
      %v2617 = vmax.f32 %v2528, 0.0
      %v2618 = vmax.f32 %v2604, 0.0
      %v2619 = vmax.f32 %v2379, 0.0
      %v2620 = vmax.f32 %v2455, 0.0
      %v2621 = vmax.f32 %v2531, 0.0
      %v2622 = vmax.f32 %v2607, 0.0
      %v2623 = vmax.f32 %v2381, 0.0
      %v2624 = vmax.f32 %v2457, 0.0
      %v2625 = vmax.f32 %v2533, 0.0
      %v2626 = vmax.f32 %v2609, 0.0
      %v2627 = vld [vmem:[%s7] sm:$0xf]
      %v2629 = vperm.slane %v2627, 0
      %v2630 = vperm.slane %v2627, 1
      %v2631 = vperm.slane %v2627, 2
      %v2632 = vperm.slane %v2627, 3
      %v2637 = vmul.f32 %v2611, %v2629
      %v2638 = vmul.f32 %v2612, %v2630
      %v2639 = vmul.f32 %v2613, %v2631
      %v2640 = vmul.f32 %v2614, %v2632
      %v2641 = vmul.f32 %v2615, %v2629
      %v2642 = vmul.f32 %v2616, %v2630
      %v2643 = vmul.f32 %v2617, %v2631
      %v2644 = vmul.f32 %v2618, %v2632
      %v2645 = vmul.f32 %v2619, %v2629
      %v2646 = vmul.f32 %v2620, %v2630
      %v2647 = vmul.f32 %v2621, %v2631
      %v2648 = vmul.f32 %v2622, %v2632
      %v2649 = vmul.f32 %v2623, %v2629
      %v2650 = vmul.f32 %v2624, %v2630
      %v2651 = vmul.f32 %v2625, %v2631
      %v2652 = vmul.f32 %v2626, %v2632
      %v2653 = vadd.f32 %v2637, %v2638
      %v2654 = vadd.f32 %v2653, %v2639
      %v2655 = vadd.f32 %v2654, %v2640
      %2656 = vadd.xlane.f32.xlu0 %v2655
      %v2657 = vpop.xlane.xlu0 %2656
      %v2658 = vadd.f32 %v2641, %v2642
      %v2659 = vadd.f32 %v2658, %v2643
      %v2660 = vadd.f32 %v2659, %v2644
      %2661 = vadd.xlane.f32.xlu0 %v2660
      %v2662 = vpop.xlane.xlu0 %2661
      %v2663 = vadd.f32 %v2645, %v2646
      %v2664 = vadd.f32 %v2663, %v2647
      %v2665 = vadd.f32 %v2664, %v2648
      %2666 = vadd.xlane.f32.xlu0 %v2665
      %v2667 = vpop.xlane.xlu0 %2666
      %v2668 = vadd.f32 %v2649, %v2650
      %v2669 = vadd.f32 %v2668, %v2651
      %v2670 = vadd.f32 %v2669, %v2652
      %2671 = vadd.xlane.f32.xlu0 %v2670
      %v2672 = vpop.xlane.xlu0 %2671
      %v2673 = vld [vmem:[#allocation2] sm:$0x1]
      %v2675 = vperm.slane %v2673, 0
      %v2677 = vadd.f32 %v2657, %v2675
      %v2678 = vadd.f32 %v2662, %v2675
      %v2679 = vadd.f32 %v2667, %v2675
      %v2680 = vadd.f32 %v2672, %v2675
      %2682 = vset.pattern.permute.xlu0 0
      %2683 = vperm.xlu0 %2682, %v2677
      %v2684 = vpop.permute.xlu0 %2683
      %2687 = vset.pattern.permute.xlu0 0
      %2688 = vperm.xlu0 %2687, %v2678
      %v2689 = vpop.permute.xlu0 %2688
      %2692 = vset.pattern.permute.xlu0 0
      %2693 = vperm.xlu0 %2692, %v2679
      %v2694 = vpop.permute.xlu0 %2693
      %2697 = vset.pattern.permute.xlu0 0
      %2698 = vperm.xlu0 %2697, %v2680
      %v2699 = vpop.permute.xlu0 %2698
      %vm2701 = vcmask 64512
      %2702 = vst.msk [vmem:[%s339] sm:$0xff] %vm2701, %v2684
      %2703 = vst.msk [vmem:[%s339 + $0x8] sm:$0xff] %vm2701, %v2689
      %2704 = vst.msk [vmem:[%s339 + $0x10] sm:$0xff] %vm2701, %v2694
      %2705 = vst.msk [vmem:[%s339 + $0x18] sm:$0xff] %vm2701, %v2699
      %s2706 = smul.u32 4, %s22
      %p2707 = scmp.lt.s32.totalorder %s2706, 11
      %s2708 = scalar_select %p2707, %s2706, 11
      %s2709 = smul.addr %s2708, 8
      %s2710 = scalar_lea.vmem %s9, %s2709
      // Predicated region
      $region57: #{clip_adapter_length_regressor.1} parent=55 // pred_check
        %p2711 = pneg %p234
      $region58: #{clip_adapter_length_regressor.1} parent=55 // pred_check_branch
        %2713 = sbr.rel (%p2711) target = $region60
      $region59: #{clip_adapter_length_regressor.1} parent=55 // pred_region
        %s2714 = smul.u32 4, %s22
      $region60: #{clip_adapter_length_regressor.1} parent=55 // pred_fallthru
        _
    $region56: #{clip_adapter_length_regressor.1} parent=5 // pred_fallthru
      _
    %p2715 = scmp.le.s32.totalorder 2, %s17
    // Predicated region
    $region61: #{clip_adapter_length_regressor.1} parent=5 // pred_check
      %p2716 = pneg %p2715
    $region62: #{clip_adapter_length_regressor.1} parent=5 // pred_check_branch
      %2718 = sbr.rel (%p2716) target = $region64
    $region63: #{clip_adapter_length_regressor.1} parent=5 // pred_region
      %s2719 = ssub.s32 %s17, 2
      // Predicated region
      $region65: #{clip_adapter_length_regressor.1} parent=63 // pred_check
        %p2720 = pneg %p240
      $region66: #{clip_adapter_length_regressor.1} parent=63 // pred_check_branch
        %2722 = sbr.rel (%p2720) target = $region68
      $region67: #{clip_adapter_length_regressor.1} parent=63 // pred_region
        %s2723 = smul.u32 4, %s23
        %p2724 = scmp.lt.s32.totalorder %s2723, 11
        %s2725 = scalar_select %p2724, %s2723, 11
        %s2726 = smul.addr %s2725, 8
        %s2727 = scalar_lea.vmem %s9, %s2726
      $region68: #{clip_adapter_length_regressor.1} parent=63 // pred_fallthru
        _
    $region64: #{clip_adapter_length_regressor.1} parent=5 // pred_fallthru
      _
  $region6: #{clip_adapter_length_regressor.1} parent=0 // loop_footer
    %s21 = sadd.s32 1, %s17
  $region7: #{clip_adapter_length_regressor.1} parent=0 // loop_footer_branch
    %16 = sbr.rel target = $region3
  $region8: #{clip_adapter_length_regressor.1} parent=0 // loop_exit
    _

</llo_original>
